<compile_context>
chip_gen: v5e
topology: v5e:2x2
jax: 0.10.0
libtpu: 0.0.40
codegen_flags: <defaults>
</compile_context>

<pallas_src>
import functools

import jax
import jax.numpy as jnp
from jax.experimental import pallas as pl
from jax.experimental.pallas import tpu as pltpu

_EPS = 1e-5


# ------------------------------ in-kernel helpers ------------------------------

def _gelu(x):
    """Exact-erf GELU (A&S 7.1.26 poly, |err|~1.5e-7) with approx reciprocal."""
    a1, a2, a3, a4, a5 = (0.254829592, -0.284496736, 1.421413741,
                          -1.453152027, 1.061405429)
    p = 0.3275911
    z = x * 0.7071067811865476
    az = jnp.abs(z)
    t = pl.reciprocal(1.0 + p * az, approx=True)       # EUP, not VALU Newton
    poly = ((((a5 * t + a4) * t + a3) * t + a2) * t + a1) * t
    erf_az = 1.0 - poly * jnp.exp(-az * az)
    erf_z = jnp.where(z >= 0.0, erf_az, -erf_az)
    return 0.5 * x * (1.0 + erf_z)


# ---------------------------------- kernels ------------------------------------

def _dw_gelu_kernel(u_ref, bnp_ref, dw_ref, t_ref, sum_ref, sq_ref, pad_ref,
                    *, H, W):
    """t = GELU(dwconv3x3(bn_prev(u)) + b); per-channel (sum, sumsq) of t.

    u_ref   : (1, tc, H*W)   previous block's un-normalized output (or x)
    bnp_ref : (tc, 2)        bn2 of previous block as [scale, shift] (folded in)
    dw_ref  : (tc, 10)       9 depthwise taps (row-major 3x3) + bias
    pad_ref : (tc, H*W+2W+2) VMEM scratch: zero-padded halo along flattened HW
    """
    tc = u_ref.shape[1]
    HW = H * W
    P = W + 1

    scale_p = bnp_ref[:, 0:1]
    shift_p = bnp_ref[:, 1:2]
    y = u_ref[0].astype(jnp.float32) * scale_p + shift_p          # (tc, HW)

    # Zero-padded halo in VMEM (review: "zero-fill a VMEM scratch" instead of a
    # wrapper-level jnp.pad).  Out-of-image rows land in the zero pad; only the
    # column wrap (j==0 / j==W-1) still needs a mask.
    pad_ref[...] = jnp.zeros_like(pad_ref)
    pad_ref[:, P:P + HW] = y

    col = jax.lax.broadcasted_iota(jnp.int32, (tc, HW), 1) % W
    mask_l = col >= 1           # left neighbour exists  (dj = -1)
    mask_r = col <= W - 2       # right neighbour exists (dj = +1)

    acc = jnp.zeros((tc, HW), jnp.float32)
    k = 0
    for di in (-1, 0, 1):
        for dj in (-1, 0, 1):
            off = P + di * W + dj
            v = pad_ref[:, off:off + HW]
            if dj == -1:
                v = jnp.where(mask_l, v, 0.0)
            elif dj == 1:
                v = jnp.where(mask_r, v, 0.0)
            acc = acc + v * dw_ref[:, k:k + 1]
            k += 1
    acc = acc + dw_ref[:, 9:10]

    t = _gelu(acc)
    t_ref[0] = t.astype(t_ref.dtype)
    sum_ref[0] = jnp.sum(t, axis=1, keepdims=True)                # (tc, 1)
    sq_ref[0] = jnp.sum(t * t, axis=1, keepdims=True)


def _pw_core(t_ref, up_ref, bn1_ref, bnp_ref, pww_ref, pwb_ref):
    """u = GELU(Wpw @ (bn1(t) + bn_prev(u_prev)) + b) for one (C, tm) tile."""
    s1 = bn1_ref[:, 0:1]
    h1 = bn1_ref[:, 1:2]
    sp = bnp_ref[:, 0:1]
    hp = bnp_ref[:, 1:2]
    r = (t_ref[0].astype(jnp.float32) * s1 + h1
         + up_ref[0].astype(jnp.float32) * sp + hp)               # (C, tm)
    # 1x1 conv: bf16 operands, f32 accumulation (native MXU path); output keeps
    # the spatial axis on lanes, so it stays lane-dense.
    u = jnp.dot(pww_ref[...], r.astype(jnp.bfloat16),
                preferred_element_type=jnp.float32)
    return _gelu(u + pwb_ref[...])


def _pw_gelu_kernel(t_ref, up_ref, bn1_ref, bnp_ref, pww_ref, pwb_ref,
                    u_ref, sum_ref, sq_ref):
    u = _pw_core(t_ref, up_ref, bn1_ref, bnp_ref, pww_ref, pwb_ref)
    u_ref[0] = u.astype(u_ref.dtype)
    sum_ref[0, 0] = jnp.sum(u, axis=1, keepdims=True)             # (C, 1)
    sq_ref[0, 0] = jnp.sum(u * u, axis=1, keepdims=True)


def _pw_pool_kernel(t_ref, up_ref, bn1_ref, bnp_ref, pww_ref, pwb_ref,
                    sum_ref, sq_ref):
    # Last DCovN block: u is consumed only by (BN + global average pool), so it
    # is never written to HBM; only the per-tile partial sums leave the kernel.
    u = _pw_core(t_ref, up_ref, bn1_ref, bnp_ref, pww_ref, pwb_ref)
    sum_ref[0, 0] = jnp.sum(u, axis=1, keepdims=True)
    sq_ref[0, 0] = jnp.sum(u * u, axis=1, keepdims=True)


def _scale_kernel(x_ref, att_ref, o_ref):
    # out = x * exp(sigmoid(fc(pooled))) broadcast per (batch, channel)
    o_ref[0] = x_ref[0] * att_ref[0]


# ------------------------------- pallas wrappers --------------------------------

def _cparams(n_axes):
    return pltpu.CompilerParams(dimension_semantics=("parallel",) * n_axes)


def _pick_channel_tile(C, HW, target_bytes=1 << 20):
    cands = [d for d in range(8, C + 1, 8) if C % d == 0]
    if not cands:
        return C
    fit = [d for d in cands if d * HW * 4 <= target_bytes]
    return max(fit) if fit else min(cands)


def _pick_spatial_tile(C, HW, target_bytes=1 << 20):
    cands = [m for m in range(128, HW + 1, 128) if HW % m == 0]
    if not cands:
        return HW
    fit = [m for m in cands if C * m * 4 <= target_bytes]
    return max(fit) if fit else min(cands)


def _dw_gelu(u, bn_prev, dw, H, W, tc):
    B, C, HW = u.shape
    nc = C // tc
    kern = functools.partial(_dw_gelu_kernel, H=H, W=W)
    act = pl.BlockSpec((1, tc, HW), lambda b, c: (b, c, 0))
    chan = lambda shape: pl.BlockSpec(shape, lambda b, c: (c, 0))
    stat = pl.BlockSpec((1, tc, 1), lambda b, c: (b, c, 0))
    return pl.pallas_call(
        kern,
        out_shape=(jax.ShapeDtypeStruct((B, C, HW), jnp.bfloat16),
                   jax.ShapeDtypeStruct((B, C, 1), jnp.float32),
                   jax.ShapeDtypeStruct((B, C, 1), jnp.float32)),
        grid=(B, nc),
        in_specs=[act, chan((tc, 2)), chan((tc, 10))],
        out_specs=(act, stat, stat),
        scratch_shapes=[pltpu.VMEM((tc, HW + 2 * (W + 1)), jnp.float32)],
        compiler_params=_cparams(2),
    )(u, bn_prev, dw)


def _residual_pw(t, u_prev, bn1, bn_prev, pww_bf16, pwb, tm, write_u):
    B, C, HW = t.shape
    ns = HW // tm
    act = pl.BlockSpec((1, C, tm), lambda b, s: (b, 0, s))
    const = lambda shape: pl.BlockSpec(shape, lambda b, s: (0,) * len(shape))
    stat = pl.BlockSpec((1, 1, C, 1), lambda b, s: (b, s, 0, 0))
    stat_shape = jax.ShapeDtypeStruct((B, ns, C, 1), jnp.float32)
    in_specs = [act, act, const((C, 2)), const((C, 2)),
                const((C, C)), const((C, 1))]
    if write_u:
        out_shape = (jax.ShapeDtypeStruct((B, C, HW), jnp.bfloat16),
                     stat_shape, stat_shape)
        out_specs = (act, stat, stat)
        kern = _pw_gelu_kernel
    else:
        out_shape = (stat_shape, stat_shape)
        out_specs = (stat, stat)
        kern = _pw_pool_kernel
    return pl.pallas_call(
        kern, out_shape=out_shape, grid=(B, ns),
        in_specs=in_specs, out_specs=out_specs,
        compiler_params=_cparams(2),
    )(t, u_prev, bn1, bn_prev, pww_bf16, pwb)


def _scale(x3, att, tm):
    B, C, HW = x3.shape
    ns = HW // tm
    act = pl.BlockSpec((1, C, tm), lambda b, s: (b, 0, s))
    return pl.pallas_call(
        _scale_kernel,
        out_shape=jax.ShapeDtypeStruct((B, C, HW), jnp.float32),
        grid=(B, ns),
        in_specs=[act, pl.BlockSpec((1, C, 1), lambda b, s: (b, 0, 0))],
        out_specs=act,
        compiler_params=_cparams(2),
    )(x3, att)


def _bn_finalize(s_parts, q_parts, count, eps=_EPS):
    """Tiny per-channel finalize of the two-pass BatchNorm (plain-JAX glue).

    Partial sums are f32; E[x^2]-E[x]^2 is fine at these magnitudes (review
    note: switch to centered partials if activations can be very large)."""
    C = s_parts.shape[-2]
    tot = jnp.sum(s_parts.reshape(-1, C), axis=0)
    tot_q = jnp.sum(q_parts.reshape(-1, C), axis=0)
    mean = tot / count
    var = tot_q / count - mean * mean                  # biased variance
    inv = jax.lax.rsqrt(var + eps)
    bn = jnp.stack([inv, -mean * inv], axis=1)         # (C, 2): [scale, shift]
    return bn, mean, inv


# ----------------------------------- forward ------------------------------------

def seam_forward(x_nchw, params, return_pooled=False):
    """SEAM.forward; x_nchw is PyTorch-layout (B, C, H, W)."""
    x = x_nchw.astype(jnp.float32)
    B, C, H, W = x.shape
    HW = H * W
    x3 = x.reshape(B, C, HW)                           # free (row-major) reshape
    tc = _pick_channel_tile(C, HW)
    tm = _pick_spatial_tile(C, HW)
    n = len(params["dcovn"])
    cnt = float(B * HW)

    u = x3                                             # un-normalized activation
    bn_prev = jnp.stack([jnp.ones((C,), jnp.float32),  # identity affine for x
                         jnp.zeros((C,), jnp.float32)], axis=1)
    pooled = None
    for i, blk in enumerate(params["dcovn"]):
        dw = jnp.concatenate([blk["dw_w"].reshape(C, 9),
                              blk["dw_b"].reshape(C, 1)], axis=1)   # (C, 10)
        t, s1, q1 = _dw_gelu(u, bn_prev, dw, H, W, tc)
        bn1, _, _ = _bn_finalize(s1, q1, cnt)
        pww = blk["pw_w"].astype(jnp.bfloat16)                      # (Cout, Cin)
        pwb = blk["pw_b"].reshape(C, 1)
        if i < n - 1:
            u, s2, q2 = _residual_pw(t, u, bn1, bn_prev, pww, pwb, tm, True)
            bn_prev, _, _ = _bn_finalize(s2, q2, cnt)               # folded later
        else:
            s2, q2 = _residual_pw(t, u, bn1, bn_prev, pww, pwb, tm, False)
            _, mean2, inv2 = _bn_finalize(s2, q2, cnt)
            # global avg pool of bn2(u) recovered exactly from the partial sums
            sum_b = jnp.sum(s2[..., 0], axis=1)                     # (B, C)
            pooled = (sum_b / float(HW) - mean2) * inv2

    # SE tail in plain JAX (few hundred FLOPs; a pallas_call would cost more
    # in launch/DMA overhead than the math -- per perf review).
    h = jnp.maximum(pooled @ params["fc1"].T, 0.0)
    att = jnp.exp(jax.nn.sigmoid(h @ params["fc2"].T))              # (B, C)

    out = _scale(x3, att[:, :, None], tm).reshape(B, C, H, W)
    if return_pooled:
        return out, pooled
    return out


# ------------------------------ parameter setup ---------------------------------

def init_seam_params(key, c, n, reduction=16):
    """Deterministic synthetic init mirroring SEAM.__init__ shapes/init styles."""
    params = {"dcovn": []}
    for _ in range(n):
        key, k1, k2, k3, k4 = jax.random.split(key, 5)
        b_dw = (6.0 / 18.0) ** 0.5                      # xavier_uniform, 3x3 dw
        dw_w = jax.random.uniform(k1, (c, 3, 3), jnp.float32, -b_dw, b_dw)
        dw_b = jax.random.uniform(k2, (c,), jnp.float32, -1.0 / 3.0, 1.0 / 3.0)
        b_pw = (6.0 / (2.0 * c)) ** 0.5
        pw_w = jax.random.uniform(k3, (c, c), jnp.float32, -b_pw, b_pw)
        b_b = 1.0 / (c ** 0.5)
        pw_b = jax.random.uniform(k4, (c,), jnp.float32, -b_b, b_b)
        params["dcovn"].append(dict(dw_w=dw_w, dw_b=dw_b, pw_w=pw_w, pw_b=pw_b))
    cr = max(1, c // reduction)
    key, k5, k6 = jax.random.split(key, 3)
    params["fc1"] = 0.001 * jax.random.normal(k5, (cr, c), jnp.float32)  # (Cr,C)
    params["fc2"] = 0.001 * jax.random.normal(k6, (c, cr), jnp.float32)  # (C,Cr)
    return params


# ------------------------------ pure-JAX reference -------------------------------

def seam_reference(x, params, eps=_EPS, return_pooled=False):
    x = x.astype(jnp.float32)
    B, C, H, W = x.shape

    def gelu(v):
        return 0.5 * v * (1.0 + jax.scipy.special.erf(v / jnp.sqrt(2.0)))

    def bn(v):
        m = jnp.mean(v, axis=(0, 2, 3), keepdims=True)
        var = jnp.mean((v - m) ** 2, axis=(0, 2, 3), keepdims=True)
        return (v - m) / jnp.sqrt(var + eps)

    y = x
    for blk in params["dcovn"]:
        dw = blk["dw_w"].reshape(C, 1, 3, 3)                        # OIHW, I=1
        t = jax.lax.conv_general_dilated(
            y, dw, window_strides=(1, 1), padding=((1, 1), (1, 1)),
            dimension_numbers=("NCHW", "OIHW", "NCHW"),
            feature_group_count=C) + blk["dw_b"].reshape(1, C, 1, 1)
        t = bn(gelu(t)) + y                                          # Residual
        pw = blk["pw_w"].reshape(C, C, 1, 1)
        u = jax.lax.conv_general_dilated(
            t, pw, window_strides=(1, 1), padding="VALID",
            dimension_numbers=("NCHW", "OIHW", "NCHW")) + blk["pw_b"].reshape(1, C, 1, 1)
        y = bn(gelu(u))

    pooled = jnp.mean(y, axis=(2, 3))                                # (B, C)
    h = jnp.maximum(pooled @ params["fc1"].T, 0.0)
    att = jnp.exp(jax.nn.sigmoid(h @ params["fc2"].T))
    out = x * att[:, :, None, None]
    if return_pooled:
        return out, pooled
    return out


# ------------------------------------ main ---------------------------------------

if __name__ == "__main__":
    B, C, H, W = 2, 32, 16, 16       # c1 == c2 == 32, reduction=16 -> hidden=2
    n_blocks = 2                     # exercise both intermediate & last paths

    key = jax.random.PRNGKey(0)
    kx, kp = jax.random.split(key)
    x = jax.random.normal(kx, (B, C, H, W), jnp.float32)   # PyTorch NCHW input
    params = init_seam_params(kp, C, n_blocks, reduction=16)

    out, pooled = seam_forward(x, params, return_pooled=True)
    out = jax.block_until_ready(out)

    ref_out, ref_pooled = seam_reference(x, params, return_pooled=True)
    assert out.shape == x.shape, (out.shape, x.shape)

    # End-to-end check (module semantics).
    assert jnp.allclose(out, ref_out, rtol=1e-3, atol=1e-3), (
        f"out max_err={float(jnp.max(jnp.abs(out - ref_out)))}")
    # The SE gate's 0.001-std fc init attenuates DCovN-branch error, so also
    # check the pre-fc pooled vector; tolerance absorbs bf16-matmul / bf16
    # activation storage / approx-reciprocal GELU numerics but catches any
    # structural bug in the conv/BN pipeline.
    assert jnp.allclose(pooled, ref_pooled, rtol=0.0, atol=1e-2), (
        f"pooled max_err={float(jnp.max(jnp.abs(pooled - ref_pooled)))}")

    print("KERNEL_OK")
</pallas_src>

<mosaic_0001>
module attributes {stable_mosaic.version = 11 : i64} {
  func.func @_dw_gelu_kernel(%arg0: i32, %arg1: i32, %arg2: memref<1x32x256xf32, #tpu.memory_space<vmem>>, %arg3: memref<32x2xf32, #tpu.memory_space<vmem>>, %arg4: memref<32x10xf32, #tpu.memory_space<vmem>>, %arg5: memref<1x32x256xbf16, #tpu.memory_space<vmem>>, %arg6: memref<1x32x1xf32, #tpu.memory_space<vmem>>, %arg7: memref<1x32x1xf32, #tpu.memory_space<vmem>>, %arg8: memref<32x290xf32, #tpu.memory_space<vmem>>) attributes {dimension_semantics = [#tpu.dimension_semantics<parallel>, #tpu.dimension_semantics<parallel>], iteration_bounds = array<i64: 2, 1>, scalar_prefetch = 0 : i64, scratch_operands = 1 : i64, tpu.core_type = #tpu.core_type<tc>, window_params = [{transform_indices = @transform_0, window_bounds = array<i64: 1, 32, 256>}, {transform_indices = @transform_1, window_bounds = array<i64: 32, 2>}, {transform_indices = @transform_2, window_bounds = array<i64: 32, 10>}, {transform_indices = @transform_3, window_bounds = array<i64: 1, 32, 256>}, {transform_indices = @transform_4, window_bounds = array<i64: 1, 32, 1>}, {transform_indices = @transform_5, window_bounds = array<i64: 1, 32, 1>}]} {
    %c0 = arith.constant 0 : index
    %c0_0 = arith.constant 0 : index
    %0 = vector.load %arg3[%c0, %c0_0] : memref<32x2xf32, #tpu.memory_space<vmem>>, vector<32x1xf32>
    %c0_1 = arith.constant 0 : index
    %c1 = arith.constant 1 : index
    %1 = vector.load %arg3[%c0_1, %c1] : memref<32x2xf32, #tpu.memory_space<vmem>>, vector<32x1xf32>
    %c0_2 = arith.constant 0 : index
    %c0_3 = arith.constant 0 : index
    %c0_4 = arith.constant 0 : index
    %2 = vector.load %arg2[%c0_2, %c0_3, %c0_4] : memref<1x32x256xf32, #tpu.memory_space<vmem>>, vector<1x32x256xf32>
    %3 = vector.shape_cast %2 : vector<1x32x256xf32> to vector<32x256xf32>
    %4 = vector.broadcast %0 : vector<32x1xf32> to vector<32x256xf32>
    %5 = arith.mulf %3, %4 : vector<32x256xf32>
    %6 = vector.broadcast %1 : vector<32x1xf32> to vector<32x256xf32>
    %7 = arith.addf %5, %6 : vector<32x256xf32>
    %cst = arith.constant 0.000000e+00 : f32
    %8 = vector.broadcast %cst : f32 to vector<32x290xf32>
    %c0_5 = arith.constant 0 : index
    %c0_6 = arith.constant 0 : index
    %9 = vector.load %arg8[%c0_5, %c0_6] : memref<32x290xf32, #tpu.memory_space<vmem>>, vector<32x290xf32>
    tpu.vector_store %arg8[%c0_5, %c0_6], %8 {strides = array<i32>} : memref<32x290xf32, #tpu.memory_space<vmem>>, vector<32x290xf32>,
    %c0_7 = arith.constant 0 : index
    %c17 = arith.constant 17 : index
    %10 = vector.load %arg8[%c0_7, %c17] : memref<32x290xf32, #tpu.memory_space<vmem>>, vector<32x256xf32>
    tpu.vector_store %arg8[%c0_7, %c17], %7 {strides = array<i32>} : memref<32x290xf32, #tpu.memory_space<vmem>>, vector<32x256xf32>,
    %11 = tpu.iota {dimensions = array<i32: 1>} : vector<32x256xi32>
    %c16_i32 = arith.constant 16 : i32
    %c0_i32 = arith.constant 0 : i32
    %12 = arith.cmpi eq, %c16_i32, %c0_i32 : i32
    %c1_i32 = arith.constant 1 : i32
    %13 = arith.select %12, %c1_i32, %c16_i32 : i32
    %14 = vector.broadcast %13 : i32 to vector<32x256xi32>
    %15 = arith.remsi %11, %14 : vector<32x256xi32>
    %c0_i32_8 = arith.constant 0 : i32
    %16 = vector.broadcast %c0_i32_8 : i32 to vector<32x256xi32>
    %17 = arith.cmpi ne, %15, %16 : vector<32x256xi32>
    %c0_i32_9 = arith.constant 0 : i32
    %18 = vector.broadcast %c0_i32_9 : i32 to vector<32x256xi32>
    %19 = arith.cmpi slt, %15, %18 : vector<32x256xi32>
    %c0_i32_10 = arith.constant 0 : i32
    %20 = arith.cmpi slt, %13, %c0_i32_10 : i32
    %21 = vector.broadcast %20 : i1 to vector<32x256xi1>
    %22 = vector.broadcast %21 : vector<32x256xi1> to vector<32x256xi1>
    %23 = arith.xori %19, %22 : vector<32x256xi1>
    %24 = arith.andi %23, %17 : vector<32x256xi1>
    %25 = vector.broadcast %13 : i32 to vector<32x256xi32>
    %26 = arith.addi %15, %25 : vector<32x256xi32>
    %27 = arith.select %24, %26, %15 : vector<32x256xi1>, vector<32x256xi32>
    %c1_i32_11 = arith.constant 1 : i32
    %28 = vector.broadcast %c1_i32_11 : i32 to vector<32x256xi32>
    %29 = arith.cmpi sge, %27, %28 : vector<32x256xi32>
    %c14_i32 = arith.constant 14 : i32
    %30 = vector.broadcast %c14_i32 : i32 to vector<32x256xi32>
    %31 = arith.cmpi sle, %27, %30 : vector<32x256xi32>
    %cst_12 = arith.constant 0.000000e+00 : f32
    %32 = vector.broadcast %cst_12 : f32 to vector<32x256xf32>
    %c0_13 = arith.constant 0 : index
    %c0_14 = arith.constant 0 : index
    %33 = vector.load %arg8[%c0_13, %c0_14] : memref<32x290xf32, #tpu.memory_space<vmem>>, vector<32x256xf32>
    %cst_15 = arith.constant 0.000000e+00 : f32
    %34 = vector.broadcast %cst_15 : f32 to vector<32x256xf32>
    %35 = arith.select %29, %33, %34 : vector<32x256xi1>, vector<32x256xf32>
    %c0_16 = arith.constant 0 : index
    %c0_17 = arith.constant 0 : index
    %36 = vector.load %arg4[%c0_16, %c0_17] : memref<32x10xf32, #tpu.memory_space<vmem>>, vector<32x1xf32>
    %37 = vector.broadcast %36 : vector<32x1xf32> to vector<32x256xf32>
    %38 = arith.mulf %35, %37 : vector<32x256xf32>
    %39 = arith.addf %32, %38 : vector<32x256xf32>
    %c0_18 = arith.constant 0 : index
    %c1_19 = arith.constant 1 : index
    %40 = vector.load %arg8[%c0_18, %c1_19] : memref<32x290xf32, #tpu.memory_space<vmem>>, vector<32x256xf32>
    %c0_20 = arith.constant 0 : index
    %c1_21 = arith.constant 1 : index
    %41 = vector.load %arg4[%c0_20, %c1_21] : memref<32x10xf32, #tpu.memory_space<vmem>>, vector<32x1xf32>
    %42 = vector.broadcast %41 : vector<32x1xf32> to vector<32x256xf32>
    %43 = arith.mulf %40, %42 : vector<32x256xf32>
    %44 = arith.addf %39, %43 : vector<32x256xf32>
    %c0_22 = arith.constant 0 : index
    %c2 = arith.constant 2 : index
    %45 = vector.load %arg8[%c0_22, %c2] : memref<32x290xf32, #tpu.memory_space<vmem>>, vector<32x256xf32>
    %cst_23 = arith.constant 0.000000e+00 : f32
    %46 = vector.broadcast %cst_23 : f32 to vector<32x256xf32>
    %47 = arith.select %31, %45, %46 : vector<32x256xi1>, vector<32x256xf32>
    %c0_24 = arith.constant 0 : index
    %c2_25 = arith.constant 2 : index
    %48 = vector.load %arg4[%c0_24, %c2_25] : memref<32x10xf32, #tpu.memory_space<vmem>>, vector<32x1xf32>
    %49 = vector.broadcast %48 : vector<32x1xf32> to vector<32x256xf32>
    %50 = arith.mulf %47, %49 : vector<32x256xf32>
    %51 = arith.addf %44, %50 : vector<32x256xf32>
    %c0_26 = arith.constant 0 : index
    %c16 = arith.constant 16 : index
    %52 = vector.load %arg8[%c0_26, %c16] : memref<32x290xf32, #tpu.memory_space<vmem>>, vector<32x256xf32>
    %cst_27 = arith.constant 0.000000e+00 : f32
    %53 = vector.broadcast %cst_27 : f32 to vector<32x256xf32>
    %54 = arith.select %29, %52, %53 : vector<32x256xi1>, vector<32x256xf32>
    %c0_28 = arith.constant 0 : index
    %c3 = arith.constant 3 : index
    %55 = vector.load %arg4[%c0_28, %c3] : memref<32x10xf32, #tpu.memory_space<vmem>>, vector<32x1xf32>
    %56 = vector.broadcast %55 : vector<32x1xf32> to vector<32x256xf32>
    %57 = arith.mulf %54, %56 : vector<32x256xf32>
    %58 = arith.addf %51, %57 : vector<32x256xf32>
    %c0_29 = arith.constant 0 : index
    %c17_30 = arith.constant 17 : index
    %59 = vector.load %arg8[%c0_29, %c17_30] : memref<32x290xf32, #tpu.memory_space<vmem>>, vector<32x256xf32>
    %c0_31 = arith.constant 0 : index
    %c4 = arith.constant 4 : index
    %60 = vector.load %arg4[%c0_31, %c4] : memref<32x10xf32, #tpu.memory_space<vmem>>, vector<32x1xf32>
    %61 = vector.broadcast %60 : vector<32x1xf32> to vector<32x256xf32>
    %62 = arith.mulf %59, %61 : vector<32x256xf32>
    %63 = arith.addf %58, %62 : vector<32x256xf32>
    %c0_32 = arith.constant 0 : index
    %c18 = arith.constant 18 : index
    %64 = vector.load %arg8[%c0_32, %c18] : memref<32x290xf32, #tpu.memory_space<vmem>>, vector<32x256xf32>
    %cst_33 = arith.constant 0.000000e+00 : f32
    %65 = vector.broadcast %cst_33 : f32 to vector<32x256xf32>
    %66 = arith.select %31, %64, %65 : vector<32x256xi1>, vector<32x256xf32>
    %c0_34 = arith.constant 0 : index
    %c5 = arith.constant 5 : index
    %67 = vector.load %arg4[%c0_34, %c5] : memref<32x10xf32, #tpu.memory_space<vmem>>, vector<32x1xf32>
    %68 = vector.broadcast %67 : vector<32x1xf32> to vector<32x256xf32>
    %69 = arith.mulf %66, %68 : vector<32x256xf32>
    %70 = arith.addf %63, %69 : vector<32x256xf32>
    %c0_35 = arith.constant 0 : index
    %c32 = arith.constant 32 : index
    %71 = vector.load %arg8[%c0_35, %c32] : memref<32x290xf32, #tpu.memory_space<vmem>>, vector<32x256xf32>
    %cst_36 = arith.constant 0.000000e+00 : f32
    %72 = vector.broadcast %cst_36 : f32 to vector<32x256xf32>
    %73 = arith.select %29, %71, %72 : vector<32x256xi1>, vector<32x256xf32>
    %c0_37 = arith.constant 0 : index
    %c6 = arith.constant 6 : index
    %74 = vector.load %arg4[%c0_37, %c6] : memref<32x10xf32, #tpu.memory_space<vmem>>, vector<32x1xf32>
    %75 = vector.broadcast %74 : vector<32x1xf32> to vector<32x256xf32>
    %76 = arith.mulf %73, %75 : vector<32x256xf32>
    %77 = arith.addf %70, %76 : vector<32x256xf32>
    %c0_38 = arith.constant 0 : index
    %c33 = arith.constant 33 : index
    %78 = vector.load %arg8[%c0_38, %c33] : memref<32x290xf32, #tpu.memory_space<vmem>>, vector<32x256xf32>
    %c0_39 = arith.constant 0 : index
    %c7 = arith.constant 7 : index
    %79 = vector.load %arg4[%c0_39, %c7] : memref<32x10xf32, #tpu.memory_space<vmem>>, vector<32x1xf32>
    %80 = vector.broadcast %79 : vector<32x1xf32> to vector<32x256xf32>
    %81 = arith.mulf %78, %80 : vector<32x256xf32>
    %82 = arith.addf %77, %81 : vector<32x256xf32>
    %c0_40 = arith.constant 0 : index
    %c34 = arith.constant 34 : index
    %83 = vector.load %arg8[%c0_40, %c34] : memref<32x290xf32, #tpu.memory_space<vmem>>, vector<32x256xf32>
    %cst_41 = arith.constant 0.000000e+00 : f32
    %84 = vector.broadcast %cst_41 : f32 to vector<32x256xf32>
    %85 = arith.select %31, %83, %84 : vector<32x256xi1>, vector<32x256xf32>
    %c0_42 = arith.constant 0 : index
    %c8 = arith.constant 8 : index
    %86 = vector.load %arg4[%c0_42, %c8] : memref<32x10xf32, #tpu.memory_space<vmem>>, vector<32x1xf32>
    %87 = vector.broadcast %86 : vector<32x1xf32> to vector<32x256xf32>
    %88 = arith.mulf %85, %87 : vector<32x256xf32>
    %89 = arith.addf %82, %88 : vector<32x256xf32>
    %c0_43 = arith.constant 0 : index
    %c9 = arith.constant 9 : index
    %90 = vector.load %arg4[%c0_43, %c9] : memref<32x10xf32, #tpu.memory_space<vmem>>, vector<32x1xf32>
    %91 = vector.broadcast %90 : vector<32x1xf32> to vector<32x256xf32>
    %92 = arith.addf %89, %91 : vector<32x256xf32>
    %cst_44 = arith.constant 0.707106769 : f32
    %93 = vector.broadcast %cst_44 : f32 to vector<32x256xf32>
    %94 = arith.mulf %92, %93 : vector<32x256xf32>
    %95 = math.absf %94 : vector<32x256xf32>
    %cst_45 = arith.constant 0.327591091 : f32
    %96 = vector.broadcast %cst_45 : f32 to vector<32x256xf32>
    %97 = arith.mulf %96, %95 : vector<32x256xf32>
    %cst_46 = arith.constant 1.000000e+00 : f32
    %98 = vector.broadcast %cst_46 : f32 to vector<32x256xf32>
    %99 = arith.addf %98, %97 : vector<32x256xf32>
    %100 = tpu.reciprocal %99 {approx = true} : vector<32x256xf32> -> vector<32x256xf32>
    %cst_47 = arith.constant 1.06140542 : f32
    %101 = vector.broadcast %cst_47 : f32 to vector<32x256xf32>
    %102 = arith.mulf %101, %100 : vector<32x256xf32>
    %cst_48 = arith.constant -1.45315206 : f32
    %103 = vector.broadcast %cst_48 : f32 to vector<32x256xf32>
    %104 = arith.addf %102, %103 : vector<32x256xf32>
    %105 = arith.mulf %104, %100 : vector<32x256xf32>
    %cst_49 = arith.constant 1.42141378 : f32
    %106 = vector.broadcast %cst_49 : f32 to vector<32x256xf32>
    %107 = arith.addf %105, %106 : vector<32x256xf32>
    %108 = arith.mulf %107, %100 : vector<32x256xf32>
    %cst_50 = arith.constant -0.284496725 : f32
    %109 = vector.broadcast %cst_50 : f32 to vector<32x256xf32>
    %110 = arith.addf %108, %109 : vector<32x256xf32>
    %111 = arith.mulf %110, %100 : vector<32x256xf32>
    %cst_51 = arith.constant 0.254829586 : f32
    %112 = vector.broadcast %cst_51 : f32 to vector<32x256xf32>
    %113 = arith.addf %111, %112 : vector<32x256xf32>
    %114 = arith.mulf %113, %100 : vector<32x256xf32>
    %cst_52 = arith.constant 0.000000e+00 : f32
    %115 = vector.broadcast %cst_52 : f32 to vector<32x256xf32>
    %116 = arith.subf %115, %95 : vector<32x256xf32>
    %117 = arith.mulf %116, %95 : vector<32x256xf32>
    %118 = math.exp %117 : vector<32x256xf32>
    %119 = arith.mulf %114, %118 : vector<32x256xf32>
    %cst_53 = arith.constant 1.000000e+00 : f32
    %120 = vector.broadcast %cst_53 : f32 to vector<32x256xf32>
    %121 = arith.subf %120, %119 : vector<32x256xf32>
    %cst_54 = arith.constant 0.000000e+00 : f32
    %122 = vector.broadcast %cst_54 : f32 to vector<32x256xf32>
    %123 = arith.cmpf oge, %94, %122 : vector<32x256xf32>
    %cst_55 = arith.constant 0.000000e+00 : f32
    %124 = vector.broadcast %cst_55 : f32 to vector<32x256xf32>
    %125 = arith.subf %124, %121 : vector<32x256xf32>
    %126 = arith.select %123, %121, %125 : vector<32x256xi1>, vector<32x256xf32>
    %cst_56 = arith.constant 5.000000e-01 : f32
    %127 = vector.broadcast %cst_56 : f32 to vector<32x256xf32>
    %128 = arith.mulf %127, %92 : vector<32x256xf32>
    %cst_57 = arith.constant 1.000000e+00 : f32
    %129 = vector.broadcast %cst_57 : f32 to vector<32x256xf32>
    %130 = arith.addf %129, %126 : vector<32x256xf32>
    %131 = arith.mulf %128, %130 : vector<32x256xf32>
    %132 = arith.truncf %131 : vector<32x256xf32> to vector<32x256xbf16>
    %c0_58 = arith.constant 0 : index
    %c0_59 = arith.constant 0 : index
    %c0_60 = arith.constant 0 : index
    %133 = vector.load %arg5[%c0_58, %c0_59, %c0_60] : memref<1x32x256xbf16, #tpu.memory_space<vmem>>, vector<1x32x256xbf16>
    %134 = vector.shape_cast %133 : vector<1x32x256xbf16> to vector<32x256xbf16>
    %135 = vector.shape_cast %132 : vector<32x256xbf16> to vector<1x32x256xbf16>
    tpu.vector_store %arg5[%c0_58, %c0_59, %c0_60], %135 {strides = array<i32>} : memref<1x32x256xbf16, #tpu.memory_space<vmem>>, vector<1x32x256xbf16>,
    %cst_61 = arith.constant dense<0.000000e+00> : vector<32xf32>
    %136 = vector.multi_reduction <add>, %131, %cst_61 [1] : vector<32x256xf32> to vector<32xf32>
    %137 = vector.shape_cast %136 : vector<32xf32> to vector<32x1xf32>
    %c0_62 = arith.constant 0 : index
    %c0_63 = arith.constant 0 : index
    %c0_64 = arith.constant 0 : index
    %138 = vector.load %arg6[%c0_62, %c0_63, %c0_64] : memref<1x32x1xf32, #tpu.memory_space<vmem>>, vector<1x32x1xf32>
    %139 = vector.shape_cast %138 : vector<1x32x1xf32> to vector<32x1xf32>
    %140 = vector.shape_cast %137 : vector<32x1xf32> to vector<1x32x1xf32>
    tpu.vector_store %arg6[%c0_62, %c0_63, %c0_64], %140 {strides = array<i32>} : memref<1x32x1xf32, #tpu.memory_space<vmem>>, vector<1x32x1xf32>,
    %141 = arith.mulf %131, %131 : vector<32x256xf32>
    %cst_65 = arith.constant dense<0.000000e+00> : vector<32xf32>
    %142 = vector.multi_reduction <add>, %141, %cst_65 [1] : vector<32x256xf32> to vector<32xf32>
    %143 = vector.shape_cast %142 : vector<32xf32> to vector<32x1xf32>
    %c0_66 = arith.constant 0 : index
    %c0_67 = arith.constant 0 : index
    %c0_68 = arith.constant 0 : index
    %144 = vector.load %arg7[%c0_66, %c0_67, %c0_68] : memref<1x32x1xf32, #tpu.memory_space<vmem>>, vector<1x32x1xf32>
    %145 = vector.shape_cast %144 : vector<1x32x1xf32> to vector<32x1xf32>
    %146 = vector.shape_cast %143 : vector<32x1xf32> to vector<1x32x1xf32>
    tpu.vector_store %arg7[%c0_66, %c0_67, %c0_68], %146 {strides = array<i32>} : memref<1x32x1xf32, #tpu.memory_space<vmem>>, vector<1x32x1xf32>,
    return
  }
  func.func @transform_0(%arg0: i32, %arg1: i32) -> (i32, i32, i32) {
    %c0_i32 = arith.constant 0 : i32
    %c0_i32_0 = arith.constant 0 : i32
    return %arg0, %arg1, %c0_i32 : i32, i32, i32
  }
  func.func @transform_1(%arg0: i32, %arg1: i32) -> (i32, i32) {
    %c0_i32 = arith.constant 0 : i32
    %c0_i32_0 = arith.constant 0 : i32
    return %arg1, %c0_i32 : i32, i32
  }
  func.func @transform_2(%arg0: i32, %arg1: i32) -> (i32, i32) {
    %c0_i32 = arith.constant 0 : i32
    %c0_i32_0 = arith.constant 0 : i32
    return %arg1, %c0_i32 : i32, i32
  }
  func.func @transform_3(%arg0: i32, %arg1: i32) -> (i32, i32, i32) {
    %c0_i32 = arith.constant 0 : i32
    %c0_i32_0 = arith.constant 0 : i32
    return %arg0, %arg1, %c0_i32 : i32, i32, i32
  }
  func.func @transform_4(%arg0: i32, %arg1: i32) -> (i32, i32, i32) {
    %c0_i32 = arith.constant 0 : i32
    %c0_i32_0 = arith.constant 0 : i32
    return %arg0, %arg1, %c0_i32 : i32, i32, i32
  }
  func.func @transform_5(%arg0: i32, %arg1: i32) -> (i32, i32, i32) {
    %c0_i32 = arith.constant 0 : i32
    %c0_i32_0 = arith.constant 0 : i32
    return %arg0, %arg1, %c0_i32 : i32, i32, i32
  }
}

</mosaic_0001>

<llo_original>
// kernel: tpu_custom_call.1
$region0: #{tpu_custom_call.1}
  #allocation0 [shape = 'u32[]', space=smem, size = 0x4, offset = 0x4, fixed_abs, tag = 'smem constant byte address 0x4 - core index']
  #allocation1 [shape = 'u32[72,128]{1,0:T(1,128)}', space=vmem, size = 0x9000, scoped, tag = 'internal scratch']
  #allocation2 [shape = 'f32[32,290]{1,0:T(8,128)}', space=vmem, size = 0xc000, scoped, tag = 'scratch operand']
  %s0 = inlined_call_operand.hbm [shape: f32[2,32,256], index: 0, kind: input, shape index: {}]
  %s1 = inlined_call_operand.vmem [shape: f32[32,2], index: 1, kind: input, shape index: {}]
  %s2 = inlined_call_operand.vmem [shape: f32[32,10], index: 2, kind: input, shape index: {}]
  %s3 = inlined_call_operand.hbm [shape: bf16[2,32,256], index: 3, kind: output, shape index: {0}]
  %s4 = inlined_call_operand.vmem [shape: f32[2,32,1], index: 4, kind: output, shape index: {1}]
  %s5 = inlined_call_operand.vmem [shape: f32[2,32,1], index: 5, kind: output, shape index: {2}]
  %6 = xla_tuple %s3, %s4, %s5
  %s7 = sld [smem:[#allocation0]]
  $region65: #{tpu_custom_call.1} parent=0
    _
  %s9 = ssub.s32 1, %s7
  %s10 = scalar_select 0, %s9, %s7
  $region1: #{tpu_custom_call.1} parent=0
    #allocation3 [shape = 'u8[65536]{0}', space=vmem, size = 0x10000, scoped, tag = 'input window, operand 0']
    #allocation4 [shape = 's32[2]{0}', space=sflag, size = 0x8, scoped, tag = 'scoped memory for tpu_custom_call.1']
    #allocation5 [shape = 's32[2]{0}', space=sflag, size = 0x8, scoped, tag = 'scoped memory for tpu_custom_call.1']
    #allocation6 [shape = 'u8[32768]{0}', space=vmem, size = 0x8000, scoped, tag = 'output window, operand 0']
    %11 = vsyncpa [#allocation4], 0
    %s12 = scalar_lea.sflag [#allocation4], 1
    %13 = vsyncpa %s12, 0
    %14 = vsyncpa [#allocation5], 0
    %s15 = scalar_lea.sflag [#allocation5], 1
    %16 = vsyncpa %s15, 0
    loop: start=0, step=1, limit=4
    $region2: #{tpu_custom_call.1} parent=1 // loop_pre_header
      _
    $region3: #{tpu_custom_call.1} parent=1 // loop_header
      %s18 = sphi 0, %s22
      %p19 = scmp.ge.s32.totalorder %s18, 4
      %s25 = sphi 0, %s37
      %s26 = sphi 0, %s33
      %s27 = sphi 0, %s25
      %s28 = sphi 0, %s26
      %s29 = sphi 0, %s27
      %s30 = sphi 0, %s28
      %s42 = sphi 0, %s44
      %s45 = sphi 0, %s42
      %s46 = sphi 0, %s45
      %s62 = sphi 0, %s46
      %s68 = sphi 0, %s70
      %s71 = sphi 0, %s68
      %s72 = sphi 0, %s71
      %s88 = sphi 0, %s72
      %s94 = sphi 0, %s96
      %s97 = sphi 0, %s94
      %s98 = sphi 0, %s97
      %s114 = sphi 0, %s98
      %s122 = sphi 0, %s124
      %s125 = sphi 0, %s122
      %s126 = sphi 0, %s125
      %s142 = sphi 0, %s126
      %s150 = sphi 0, %s152
      %s153 = sphi 0, %s150
      %s154 = sphi 0, %s153
      %s170 = sphi 0, %s154
      %s178 = sphi 0, %s180
      %s181 = sphi 0, %s178
      %s182 = sphi 0, %s181
      %s198 = sphi 0, %s182
    $region4: #{tpu_custom_call.1} parent=1 // loop_header_branch
      %21 = sbr.rel (%p19) target = $region8
    $region5: #{tpu_custom_call.1} parent=1 // loop_body
      %s23 = ssub.s32 %s18, 1
      %s24 = ssub.s32 %s18, 2
      %s31 = sadd.s32 1, %s26
      %p32 = scmp.ge.s32.totalorder %s31, 1
      %s33 = scalar_select %p32, 0, %s31
      %s34 = sadd.s32 1, %s25
      %s35 = scalar_select %p32, %s34, %s25
      %p36 = scmp.ge.s32.totalorder %s35, 2
      %s37 = scalar_select %p36, 0, %s35
      %s38 = ssub.s32 %s25, %s37
      %s39 = ssub.s32 %s26, %s33
      %s40 = sor.u32 %s38, %s39
      %p41 = scmp.eq.s32.totalorder %s40, 0
      %s43 = sadd.s32 %s42, 1
      %s44 = scalar_select %p41, %s42, %s43
      %p47 = pneg %p41
      %p48 = scmp.eq.s32.totalorder %s18, 1
      %p49 = por %p47, %p48
      %p50 = scmp.ne.s32.totalorder %s42, %s45
      %p51 = scmp.eq.s32.totalorder %s18, 0
      %p52 = por %p50, %p51
      %p53 = scmp.ne.s32.totalorder %s42, %s45
      %p54 = scmp.eq.s32.totalorder %s23, 1
      %p55 = por %p53, %p54
      %p56 = scmp.ne.s32.totalorder %s45, %s46
      %p57 = scmp.eq.s32.totalorder %s23, 0
      %p58 = por %p56, %p57
      %p59 = scmp.ne.s32.totalorder %s45, %s46
      %p60 = scmp.eq.s32.totalorder %s24, 1
      %p61 = por %p59, %p60
      %p63 = scmp.ne.s32.totalorder %s46, %s62
      %p64 = scmp.eq.s32.totalorder %s24, 0
      %p65 = por %p63, %p64
      %s66 = ssub.s32 %s26, %s33
      %p67 = scmp.eq.s32.totalorder %s66, 0
      %s69 = sadd.s32 %s68, 1
      %s70 = scalar_select %p67, %s68, %s69
      %p73 = pneg %p67
      %p74 = scmp.eq.s32.totalorder %s18, 1
      %p75 = por %p73, %p74
      %p76 = scmp.ne.s32.totalorder %s68, %s71
      %p77 = scmp.eq.s32.totalorder %s18, 0
      %p78 = por %p76, %p77
      %p79 = scmp.ne.s32.totalorder %s68, %s71
      %p80 = scmp.eq.s32.totalorder %s23, 1
      %p81 = por %p79, %p80
      %p82 = scmp.ne.s32.totalorder %s71, %s72
      %p83 = scmp.eq.s32.totalorder %s23, 0
      %p84 = por %p82, %p83
      %p85 = scmp.ne.s32.totalorder %s71, %s72
      %p86 = scmp.eq.s32.totalorder %s24, 1
      %p87 = por %p85, %p86
      %p89 = scmp.ne.s32.totalorder %s72, %s88
      %p90 = scmp.eq.s32.totalorder %s24, 0
      %p91 = por %p89, %p90
      %s92 = ssub.s32 %s26, %s33
      %p93 = scmp.eq.s32.totalorder %s92, 0
      %s95 = sadd.s32 %s94, 1
      %s96 = scalar_select %p93, %s94, %s95
      %p99 = pneg %p93
      %p100 = scmp.eq.s32.totalorder %s18, 1
      %p101 = por %p99, %p100
      %p102 = scmp.ne.s32.totalorder %s94, %s97
      %p103 = scmp.eq.s32.totalorder %s18, 0
      %p104 = por %p102, %p103
      %p105 = scmp.ne.s32.totalorder %s94, %s97
      %p106 = scmp.eq.s32.totalorder %s23, 1
      %p107 = por %p105, %p106
      %p108 = scmp.ne.s32.totalorder %s97, %s98
      %p109 = scmp.eq.s32.totalorder %s23, 0
      %p110 = por %p108, %p109
      %p111 = scmp.ne.s32.totalorder %s97, %s98
      %p112 = scmp.eq.s32.totalorder %s24, 1
      %p113 = por %p111, %p112
      %p115 = scmp.ne.s32.totalorder %s98, %s114
      %p116 = scmp.eq.s32.totalorder %s24, 0
      %p117 = por %p115, %p116
      %s118 = ssub.s32 %s25, %s37
      %s119 = ssub.s32 %s26, %s33
      %s120 = sor.u32 %s118, %s119
      %p121 = scmp.eq.s32.totalorder %s120, 0
      %s123 = sadd.s32 %s122, 1
      %s124 = scalar_select %p121, %s122, %s123
      %p127 = pneg %p121
      %p128 = scmp.eq.s32.totalorder %s18, 1
      %p129 = por %p127, %p128
      %p130 = scmp.ne.s32.totalorder %s122, %s125
      %p131 = scmp.eq.s32.totalorder %s18, 0
      %p132 = por %p130, %p131
      %p133 = scmp.ne.s32.totalorder %s122, %s125
      %p134 = scmp.eq.s32.totalorder %s23, 1
      %p135 = por %p133, %p134
      %p136 = scmp.ne.s32.totalorder %s125, %s126
      %p137 = scmp.eq.s32.totalorder %s23, 0
      %p138 = por %p136, %p137
      %p139 = scmp.ne.s32.totalorder %s125, %s126
      %p140 = scmp.eq.s32.totalorder %s24, 1
      %p141 = por %p139, %p140
      %p143 = scmp.ne.s32.totalorder %s126, %s142
      %p144 = scmp.eq.s32.totalorder %s24, 0
      %p145 = por %p143, %p144
      %s146 = ssub.s32 %s25, %s37
      %s147 = ssub.s32 %s26, %s33
      %s148 = sor.u32 %s146, %s147
      %p149 = scmp.eq.s32.totalorder %s148, 0
      %s151 = sadd.s32 %s150, 1
      %s152 = scalar_select %p149, %s150, %s151
      %p155 = pneg %p149
      %p156 = scmp.eq.s32.totalorder %s18, 1
      %p157 = por %p155, %p156
      %p158 = scmp.ne.s32.totalorder %s150, %s153
      %p159 = scmp.eq.s32.totalorder %s18, 0
      %p160 = por %p158, %p159
      %p161 = scmp.ne.s32.totalorder %s150, %s153
      %p162 = scmp.eq.s32.totalorder %s23, 1
      %p163 = por %p161, %p162
      %p164 = scmp.ne.s32.totalorder %s153, %s154
      %p165 = scmp.eq.s32.totalorder %s23, 0
      %p166 = por %p164, %p165
      %p167 = scmp.ne.s32.totalorder %s153, %s154
      %p168 = scmp.eq.s32.totalorder %s24, 1
      %p169 = por %p167, %p168
      %p171 = scmp.ne.s32.totalorder %s154, %s170
      %p172 = scmp.eq.s32.totalorder %s24, 0
      %p173 = por %p171, %p172
      %s174 = ssub.s32 %s25, %s37
      %s175 = ssub.s32 %s26, %s33
      %s176 = sor.u32 %s174, %s175
      %p177 = scmp.eq.s32.totalorder %s176, 0
      %s179 = sadd.s32 %s178, 1
      %s180 = scalar_select %p177, %s178, %s179
      %p183 = pneg %p177
      %p184 = scmp.eq.s32.totalorder %s18, 1
      %p185 = por %p183, %p184
      %p186 = scmp.ne.s32.totalorder %s178, %s181
      %p187 = scmp.eq.s32.totalorder %s18, 0
      %p188 = por %p186, %p187
      %p189 = scmp.ne.s32.totalorder %s178, %s181
      %p190 = scmp.eq.s32.totalorder %s23, 1
      %p191 = por %p189, %p190
      %p192 = scmp.ne.s32.totalorder %s181, %s182
      %p193 = scmp.eq.s32.totalorder %s23, 0
      %p194 = por %p192, %p193
      %p195 = scmp.ne.s32.totalorder %s181, %s182
      %p196 = scmp.eq.s32.totalorder %s24, 1
      %p197 = por %p195, %p196
      %p199 = scmp.ne.s32.totalorder %s182, %s198
      %p200 = scmp.eq.s32.totalorder %s24, 0
      %p201 = por %p199, %p200
      %p202 = scmp.le.s32.totalorder 1, %s18
      %p203 = scmp.lt.s32.totalorder %s18, 3
      %p204 = pnand %p202, %p203
      %p205 = pneg %p204
      // Predicated region
      $region9: #{tpu_custom_call.1} parent=5 // pred_check
        _
      $region10: #{tpu_custom_call.1} parent=5 // pred_check_branch
        %207 = sbr.rel (%p204) target = $region12
      $region11: #{tpu_custom_call.1} parent=5 // pred_region
        %s208 = ssub.s32 %s18, 1
        // Predicated region
        $region13: #{tpu_custom_call.1} parent=11 // pred_check
          %p209 = pneg %p84
        $region14: #{tpu_custom_call.1} parent=11 // pred_check_branch
          %211 = sbr.rel (%p209) target = $region16
        $region15: #{tpu_custom_call.1} parent=11 // pred_region
          %s212 = smul.u32 4, %s28
          %p213 = scmp.lt.s32.totalorder %s212, 3
          %s214 = scalar_select %p213, %s212, 3
          %s215 = smul.addr %s214, 8
          %s216 = scalar_lea.vmem %s1, %s215
          %s217 = smul.u32 4, %s28
        $region16: #{tpu_custom_call.1} parent=11 // pred_fallthru
          _
        // Predicated region
        $region17: #{tpu_custom_call.1} parent=11 // pred_check
          %p218 = pneg %p110
        $region18: #{tpu_custom_call.1} parent=11 // pred_check_branch
          %220 = sbr.rel (%p218) target = $region20
        $region19: #{tpu_custom_call.1} parent=11 // pred_region
          %s221 = smul.u32 4, %s28
          %p222 = scmp.lt.s32.totalorder %s221, 3
          %s223 = scalar_select %p222, %s221, 3
          %s224 = smul.addr %s223, 8
          %s225 = scalar_lea.vmem %s2, %s224
          %s226 = smul.u32 4, %s28
        $region20: #{tpu_custom_call.1} parent=11 // pred_fallthru
          _
      $region12: #{tpu_custom_call.1} parent=5 // pred_fallthru
        _
      %p227 = scmp.lt.s32.totalorder %s18, 2
      // Predicated region
      $region21: #{tpu_custom_call.1} parent=5 // pred_check
        %p228 = pneg %p227
      $region22: #{tpu_custom_call.1} parent=5 // pred_check_branch
        %230 = sbr.rel (%p228) target = $region24
      $region23: #{tpu_custom_call.1} parent=5 // pred_region
        // Predicated region
        $region25: #{tpu_custom_call.1} parent=23 // pred_check
          %p231 = pneg %p52
        $region26: #{tpu_custom_call.1} parent=23 // pred_check_branch
          %233 = sbr.rel (%p231) target = $region28
        $region27: #{tpu_custom_call.1} parent=23 // pred_region
          %s234 = sand.u32 %s42, 1
          %s235 = scalar_lea.sflag [#allocation4], %s234
          %s236 = sand.u32 %s42, 1
          %s237 = smul.addr %s236, 64
          %s238 = scalar_lea.vmem [#allocation3], %s237
          %s239 = smul.u32 4, %s26
          %241 = vsyncadd %s235, 0
          %s242 = smul.addr %s239, 2
          %s243 = smul.addr %s25, 8
          %s244 = sadd.s32 %s242, %s243
          %s245 = smul.addr %s244, 8
          %s246 = scalar_lea.hbm %s0, %s245
          %s247 = sshll.u32 %s246, 4
          %s248 = int_to_ptr.hbm [resolvable:$true] %s247
          %s249 = sshll.u32 %s238, 4
          %s250 = int_to_ptr.vmem [resolvable:$true] %s249
          %255 = dma.hbm_to_vmem [thread:$0]  %s248, 1024, %s250, %s235, 256, 256, 16
        $region28: #{tpu_custom_call.1} parent=23 // pred_fallthru
          _
      $region24: #{tpu_custom_call.1} parent=5 // pred_fallthru
        _
      %p256 = scmp.le.s32.totalorder 1, %s18
      %p257 = scmp.lt.s32.totalorder %s18, 3
      %p258 = pnand %p256, %p257
      %p259 = pneg %p258
      // Predicated region
      $region29: #{tpu_custom_call.1} parent=5 // pred_check
        _
      $region30: #{tpu_custom_call.1} parent=5 // pred_check_branch
        %261 = sbr.rel (%p258) target = $region32
      $region31: #{tpu_custom_call.1} parent=5 // pred_region
        %s262 = ssub.s32 %s18, 1
        %s263 = sand.u32 %s45, 1
        %s264 = scalar_lea.sflag [#allocation4], %s263
        %s265 = sand.u32 %s45, 1
        %s266 = smul.addr %s265, 64
        %s267 = scalar_lea.vmem [#allocation3], %s266
        // Predicated region
        $region33: #{tpu_custom_call.1} parent=31 // pred_check
          %p268 = pneg %p58
        $region34: #{tpu_custom_call.1} parent=31 // pred_check_branch
          %270 = sbr.rel (%p268) target = $region36
        $region35: #{tpu_custom_call.1} parent=31 // pred_region
          %272 = dma.done %s264, 1024
        $region36: #{tpu_custom_call.1} parent=31 // pred_fallthru
          _
        %s273 = sand.u32 %s45, 1
        %s274 = scalar_lea.sflag [#allocation4], %s273
        %s275 = sand.u32 %s45, 1
        %s276 = smul.addr %s275, 64
        %s277 = scalar_lea.vmem [#allocation3], %s276
        %p278 = pneg %p58
        %p279 = pneg %p55
        %s280 = smul.u32 4, %s28
        %p281 = scmp.lt.s32.totalorder %s280, 3
        %s282 = scalar_select %p281, %s280, 3
        %s283 = smul.addr %s282, 8
        %s284 = scalar_lea.vmem %s1, %s283
        %p285 = pneg %p84
        %p286 = pneg %p81
        %s287 = smul.u32 4, %s28
        %p288 = scmp.lt.s32.totalorder %s287, 3
        %s289 = scalar_select %p288, %s287, 3
        %s290 = smul.addr %s289, 8
        %s291 = scalar_lea.vmem %s2, %s290
        %p292 = pneg %p110
        %p293 = pneg %p107
        %p294 = pneg %p138
        %p295 = pneg %p135
        %s296 = sand.u32 %s125, 1
        %s297 = scalar_lea.sflag [#allocation5], %s296
        %s298 = sand.u32 %s125, 1
        %s299 = smul.addr %s298, 32
        %s300 = scalar_lea.vmem [#allocation6], %s299
        %p301 = pneg %p166
        %p302 = pneg %p163
        %s303 = smul.u32 4, %s28
        %p304 = scmp.lt.s32.totalorder %s27, 1
        %s305 = scalar_select %p304, %s27, 1
        %p306 = scmp.lt.s32.totalorder %s303, 3
        %s307 = scalar_select %p306, %s303, 3
        %s308 = smul.addr %s305, 4
        %s309 = sadd.s32 %s307, %s308
        %s310 = smul.addr %s309, 8
        %s311 = scalar_lea.vmem %s4, %s310
        %p312 = pneg %p194
        %p313 = pneg %p191
        %s314 = smul.u32 4, %s28
        %p315 = scmp.lt.s32.totalorder %s27, 1
        %s316 = scalar_select %p315, %s27, 1
        %p317 = scmp.lt.s32.totalorder %s314, 3
        %s318 = scalar_select %p317, %s314, 3
        %s319 = smul.addr %s316, 4
        %s320 = sadd.s32 %s318, %s319
        %s321 = smul.addr %s320, 8
        %s322 = scalar_lea.vmem %s5, %s321
        %s323 = smul.u32 4, %s28
        %s324 = smul.u32 4, %s28
        %p325 = scmp.lt.s32.totalorder %s324, 3
        %s326 = scalar_select %p325, %s324, 3
        %s327 = smul.addr %s326, 8
        %s328 = scalar_lea.vmem %s1, %s327
        %s329 = smul.u32 4, %s28
        %s330 = smul.u32 4, %s28
        %p331 = scmp.lt.s32.totalorder %s330, 3
        %s332 = scalar_select %p331, %s330, 3
        %s333 = smul.addr %s332, 8
        %s334 = scalar_lea.vmem %s2, %s333
        %s335 = smul.u32 4, %s28
        %s336 = smul.u32 4, %s28
        %s337 = smul.u32 4, %s28
        %p338 = scmp.lt.s32.totalorder %s27, 1
        %s339 = scalar_select %p338, %s27, 1
        %p340 = scmp.lt.s32.totalorder %s337, 3
        %s341 = scalar_select %p340, %s337, 3
        %s342 = smul.addr %s339, 4
        %s343 = sadd.s32 %s341, %s342
        %s344 = smul.addr %s343, 8
        %s345 = scalar_lea.vmem %s4, %s344
        %s346 = smul.u32 4, %s28
        %s347 = smul.u32 4, %s28
        %p348 = scmp.lt.s32.totalorder %s27, 1
        %s349 = scalar_select %p348, %s27, 1
        %p350 = scmp.lt.s32.totalorder %s347, 3
        %s351 = scalar_select %p350, %s347, 3
        %s352 = smul.addr %s349, 4
        %s353 = sadd.s32 %s351, %s352
        %s354 = smul.addr %s353, 8
        %s355 = scalar_lea.vmem %s5, %s354
        %s356 = smul.u32 4, %s28
        %v357 = vld [vmem:[%s328] sm:$0xff]
        %v358 = vld [vmem:[%s328 + $0x8] sm:$0xff]
        %v359 = vld [vmem:[%s328 + $0x10] sm:$0xff]
        %v360 = vld [vmem:[%s328 + $0x18] sm:$0xff]
        %v361 = vld [vmem:[%s267] sm:$0xff]
        %v362 = vld [vmem:[%s267 + $0x8] sm:$0xff]
        %v363 = vld [vmem:[%s267 + $0x10] sm:$0xff]
        %v364 = vld [vmem:[%s267 + $0x18] sm:$0xff]
        %v365 = vld [vmem:[%s267 + $0x20] sm:$0xff]
        %v366 = vld [vmem:[%s267 + $0x28] sm:$0xff]
        %v367 = vld [vmem:[%s267 + $0x30] sm:$0xff]
        %v368 = vld [vmem:[%s267 + $0x38] sm:$0xff]
        %370 = vset.pattern.permute.xlu0 0
        %371 = vperm.xlu0 %370, %v357
        %v372 = vpop.permute.xlu0 %371
        %375 = vset.pattern.permute.xlu0 0
        %376 = vperm.xlu0 %375, %v358
        %v377 = vpop.permute.xlu0 %376
        %380 = vset.pattern.permute.xlu0 0
        %381 = vperm.xlu0 %380, %v359
        %v382 = vpop.permute.xlu0 %381
        %385 = vset.pattern.permute.xlu0 0
        %386 = vperm.xlu0 %385, %v360
        %v387 = vpop.permute.xlu0 %386
        %v389 = vmul.f32 %v361, %v372
        %v390 = vmul.f32 %v362, %v372
        %v391 = vmul.f32 %v363, %v377
        %v392 = vmul.f32 %v364, %v377
        %v393 = vmul.f32 %v365, %v382
        %v394 = vmul.f32 %v366, %v382
        %v395 = vmul.f32 %v367, %v387
        %v396 = vmul.f32 %v368, %v387
        %397 = vset.pattern.permute.xlu0 1
        %398 = vperm.xlu0 %397, %v357
        %v399 = vpop.permute.xlu0 %398
        %401 = vset.pattern.permute.xlu0 1
        %402 = vperm.xlu0 %401, %v358
        %v403 = vpop.permute.xlu0 %402
        %405 = vset.pattern.permute.xlu0 1
        %406 = vperm.xlu0 %405, %v359
        %v407 = vpop.permute.xlu0 %406
        %409 = vset.pattern.permute.xlu0 1
        %410 = vperm.xlu0 %409, %v360
        %v411 = vpop.permute.xlu0 %410
        %v413 = vadd.f32 %v389, %v399
        %v414 = vadd.f32 %v390, %v399
        %v415 = vadd.f32 %v391, %v403
        %v416 = vadd.f32 %v392, %v403
        %v417 = vadd.f32 %v393, %v407
        %v418 = vadd.f32 %v394, %v407
        %v419 = vadd.f32 %v395, %v411
        %v420 = vadd.f32 %v396, %v411
        %421 = vst [vmem:[#allocation2] sm:$0xff] 0.0
        %422 = vst [vmem:[#allocation2 + $0x8] sm:$0xff] 0.0
        %vm423 = vcmask 277504
        %424 = vst.msk [vmem:[#allocation2 + $0x10] sm:$0xff] %vm423, 0.0
        %425 = vst [vmem:[#allocation2 + $0x18] sm:$0xff] 0.0
        %426 = vst [vmem:[#allocation2 + $0x20] sm:$0xff] 0.0
        %427 = vst.msk [vmem:[#allocation2 + $0x28] sm:$0xff] %vm423, 0.0
        %428 = vst [vmem:[#allocation2 + $0x30] sm:$0xff] 0.0
        %429 = vst [vmem:[#allocation2 + $0x38] sm:$0xff] 0.0
        %430 = vst.msk [vmem:[#allocation2 + $0x40] sm:$0xff] %vm423, 0.0
        %431 = vst [vmem:[#allocation2 + $0x48] sm:$0xff] 0.0
        %432 = vst [vmem:[#allocation2 + $0x50] sm:$0xff] 0.0
        %433 = vst.msk [vmem:[#allocation2 + $0x58] sm:$0xff] %vm423, 0.0
        %442 = vrot.lane.b32.xlu0 %v413, 17
        %v443 = vpop.permute.xlu0 %442
        %444 = vrot.lane.b32.xlu0 %v414, 17
        %v445 = vpop.permute.xlu0 %444
        %446 = vrot.lane.b32.xlu0 %v415, 17
        %v447 = vpop.permute.xlu0 %446
        %448 = vrot.lane.b32.xlu0 %v416, 17
        %v449 = vpop.permute.xlu0 %448
        %450 = vrot.lane.b32.xlu0 %v417, 17
        %v451 = vpop.permute.xlu0 %450
        %452 = vrot.lane.b32.xlu0 %v418, 17
        %v453 = vpop.permute.xlu0 %452
        %454 = vrot.lane.b32.xlu0 %v419, 17
        %v455 = vpop.permute.xlu0 %454
        %456 = vrot.lane.b32.xlu0 %v420, 17
        %v457 = vpop.permute.xlu0 %456
        %vm458 = vcmask 138240
        %v459 = vsel %vm458, %v443, %v445
        %v460 = vsel %vm458, %v447, %v449
        %v461 = vsel %vm458, %v451, %v453
        %v462 = vsel %vm458, %v455, %v457
        %vm475 = vcmask 1047688
        %476 = vst.msk [vmem:[#allocation2] sm:$0xff] %vm475, %v443
        %477 = vst [vmem:[#allocation2 + $0x8] sm:$0xff] %v459
        %478 = vst.msk [vmem:[#allocation2 + $0x10] sm:$0xff] %vm458, %v445
        %479 = vst.msk [vmem:[#allocation2 + $0x18] sm:$0xff] %vm475, %v447
        %480 = vst [vmem:[#allocation2 + $0x20] sm:$0xff] %v460
        %481 = vst.msk [vmem:[#allocation2 + $0x28] sm:$0xff] %vm458, %v449
        %482 = vst.msk [vmem:[#allocation2 + $0x30] sm:$0xff] %vm475, %v451
        %483 = vst [vmem:[#allocation2 + $0x38] sm:$0xff] %v461
        %484 = vst.msk [vmem:[#allocation2 + $0x40] sm:$0xff] %vm458, %v453
        %485 = vst.msk [vmem:[#allocation2 + $0x48] sm:$0xff] %vm475, %v455
        %486 = vst [vmem:[#allocation2 + $0x50] sm:$0xff] %v462
        %487 = vst.msk [vmem:[#allocation2 + $0x58] sm:$0xff] %vm458, %v457
        %v488 = vlaneseq
        %v489 = vand.u32 %v488, 127
        %v490 = vadd.s32 %v489, 128
        %vm491 = vcmp.lt.s32.totalorder %v489, 0
        %v492 = vsub.s32 0, %v489
        %v493 = vsel %vm491, %v492, %v489
        %v494 = vshrl.u32 %v493, 4
        %v495 = vand.u32 %v493, 15
        %v496 = vsub.s32 0, %v495
        %v497 = vsel %vm491, %v496, %v495
        %vm498 = vcmp.lt.s32.totalorder %v490, 0
        %v499 = vsub.s32 0, %v490
        %v500 = vsel %vm498, %v499, %v490
        %v501 = vshrl.u32 %v500, 4
        %v502 = vand.u32 %v500, 15
        %v503 = vsub.s32 0, %v502
        %v504 = vsel %vm498, %v503, %v502
        %vm505 = vcmp.ne.s32.totalorder %v497, 0
        %vm506 = vcmp.ne.s32.totalorder %v504, 0
        %vm507 = vcmp.lt.s32.totalorder %v497, 0
        %vm508 = vcmp.lt.s32.totalorder %v504, 0
        %vm509 = vmand %vm507, %vm505
        %vm510 = vmand %vm508, %vm506
        %v511 = vadd.s32 %v497, 16
        %v512 = vadd.s32 %v504, 16
        %v513 = vsel %vm509, %v511, %v497
        %v514 = vsel %vm510, %v512, %v504
        %vm515 = vcmp.ge.s32.totalorder %v513, 1
        %vm516 = vcmp.ge.s32.totalorder %v514, 1
        %vm517 = vcmp.le.s32.totalorder %v513, 14
        %vm518 = vcmp.le.s32.totalorder %v514, 14
        %v519 = vld [vmem:[#allocation2] sm:$0xff]
        %v520 = vld [vmem:[#allocation2 + $0x8] sm:$0xff]
        %v521 = vld [vmem:[#allocation2 + $0x18] sm:$0xff]
        %v522 = vld [vmem:[#allocation2 + $0x20] sm:$0xff]
        %v523 = vld [vmem:[#allocation2 + $0x30] sm:$0xff]
        %v524 = vld [vmem:[#allocation2 + $0x38] sm:$0xff]
        %v525 = vld [vmem:[#allocation2 + $0x48] sm:$0xff]
        %v526 = vld [vmem:[#allocation2 + $0x50] sm:$0xff]
        %v527 = vsel %vm515, %v519, 0.0
        %v528 = vsel %vm516, %v520, 0.0
        %v529 = vsel %vm515, %v521, 0.0
        %v530 = vsel %vm516, %v522, 0.0
        %v531 = vsel %vm515, %v523, 0.0
        %v532 = vsel %vm516, %v524, 0.0
        %v533 = vsel %vm515, %v525, 0.0
        %v534 = vsel %vm516, %v526, 0.0
        %v535 = vld [vmem:[%s334] sm:$0xff]
        %v536 = vld [vmem:[%s334 + $0x8] sm:$0xff]
        %v537 = vld [vmem:[%s334 + $0x10] sm:$0xff]
        %v538 = vld [vmem:[%s334 + $0x18] sm:$0xff]
        %540 = vset.pattern.permute.xlu0 0
        %541 = vperm.xlu0 %540, %v535
        %v542 = vpop.permute.xlu0 %541
        %545 = vset.pattern.permute.xlu0 0
        %546 = vperm.xlu0 %545, %v536
        %v547 = vpop.permute.xlu0 %546
        %550 = vset.pattern.permute.xlu0 0
        %551 = vperm.xlu0 %550, %v537
        %v552 = vpop.permute.xlu0 %551
        %555 = vset.pattern.permute.xlu0 0
        %556 = vperm.xlu0 %555, %v538
        %v557 = vpop.permute.xlu0 %556
        %v559 = vmul.f32 %v527, %v542
        %v560 = vmul.f32 %v528, %v542
        %v561 = vmul.f32 %v529, %v547
        %v562 = vmul.f32 %v530, %v547
        %v563 = vmul.f32 %v531, %v552
        %v564 = vmul.f32 %v532, %v552
        %v565 = vmul.f32 %v533, %v557
        %v566 = vmul.f32 %v534, %v557
        %v567 = vadd.f32 %v559, 0.0
        %v568 = vadd.f32 %v560, 0.0
        %v569 = vadd.f32 %v561, 0.0
        %v570 = vadd.f32 %v562, 0.0
        %v571 = vadd.f32 %v563, 0.0
        %v572 = vadd.f32 %v564, 0.0
        %v573 = vadd.f32 %v565, 0.0
        %v574 = vadd.f32 %v566, 0.0
        %v575 = vld [vmem:[#allocation2] sm:$0xff]
        %v576 = vld [vmem:[#allocation2 + $0x8] sm:$0xff]
        %v577 = vld [vmem:[#allocation2 + $0x10] sm:$0xff]
        %v578 = vld [vmem:[#allocation2 + $0x18] sm:$0xff]
        %v579 = vld [vmem:[#allocation2 + $0x20] sm:$0xff]
        %v580 = vld [vmem:[#allocation2 + $0x28] sm:$0xff]
        %v581 = vld [vmem:[#allocation2 + $0x30] sm:$0xff]
        %v582 = vld [vmem:[#allocation2 + $0x38] sm:$0xff]
        %v583 = vld [vmem:[#allocation2 + $0x40] sm:$0xff]
        %v584 = vld [vmem:[#allocation2 + $0x48] sm:$0xff]
        %v585 = vld [vmem:[#allocation2 + $0x50] sm:$0xff]
        %v586 = vld [vmem:[#allocation2 + $0x58] sm:$0xff]
        %587 = vset.pattern.permute.xlu0 1
        %588 = vperm.xlu0 %587, %v535
        %v589 = vpop.permute.xlu0 %588
        %591 = vset.pattern.permute.xlu0 1
        %592 = vperm.xlu0 %591, %v536
        %v593 = vpop.permute.xlu0 %592
        %595 = vset.pattern.permute.xlu0 1
        %596 = vperm.xlu0 %595, %v537
        %v597 = vpop.permute.xlu0 %596
        %599 = vset.pattern.permute.xlu0 1
        %600 = vperm.xlu0 %599, %v538
        %v601 = vpop.permute.xlu0 %600
        %v603 = vmul.f32 %v575, %v589
        %v604 = vmul.f32 %v576, %v589
        %v605 = vmul.f32 %v577, %v589
        %v606 = vmul.f32 %v578, %v593
        %v607 = vmul.f32 %v579, %v593
        %v608 = vmul.f32 %v580, %v593
        %v609 = vmul.f32 %v581, %v597
        %v610 = vmul.f32 %v582, %v597
        %v611 = vmul.f32 %v583, %v597
        %v612 = vmul.f32 %v584, %v601
        %v613 = vmul.f32 %v585, %v601
        %v614 = vmul.f32 %v586, %v601
        %627 = vrot.lane.b32.xlu0 %v603, 127
        %v628 = vpop.permute.xlu0 %627
        %629 = vrot.lane.b32.xlu0 %v604, 127
        %v630 = vpop.permute.xlu0 %629
        %631 = vrot.lane.b32.xlu0 %v605, 127
        %v632 = vpop.permute.xlu0 %631
        %633 = vrot.lane.b32.xlu0 %v606, 127
        %v634 = vpop.permute.xlu0 %633
        %635 = vrot.lane.b32.xlu0 %v607, 127
        %v636 = vpop.permute.xlu0 %635
        %637 = vrot.lane.b32.xlu0 %v608, 127
        %v638 = vpop.permute.xlu0 %637
        %639 = vrot.lane.b32.xlu0 %v609, 127
        %v640 = vpop.permute.xlu0 %639
        %641 = vrot.lane.b32.xlu0 %v610, 127
        %v642 = vpop.permute.xlu0 %641
        %643 = vrot.lane.b32.xlu0 %v611, 127
        %v644 = vpop.permute.xlu0 %643
        %645 = vrot.lane.b32.xlu0 %v612, 127
        %v646 = vpop.permute.xlu0 %645
        %647 = vrot.lane.b32.xlu0 %v613, 127
        %v648 = vpop.permute.xlu0 %647
        %649 = vrot.lane.b32.xlu0 %v614, 127
        %v650 = vpop.permute.xlu0 %649
        %vm651 = vcmask 1039360
        %v652 = vsel %vm651, %v628, %v630
        %v653 = vsel %vm651, %v630, %v632
        %v654 = vsel %vm651, %v634, %v636
        %v655 = vsel %vm651, %v636, %v638
        %v656 = vsel %vm651, %v640, %v642
        %v657 = vsel %vm651, %v642, %v644
        %v658 = vsel %vm651, %v646, %v648
        %v659 = vsel %vm651, %v648, %v650
        %v668 = vadd.f32 %v567, %v652
        %v669 = vadd.f32 %v568, %v653
        %v670 = vadd.f32 %v569, %v654
        %v671 = vadd.f32 %v570, %v655
        %v672 = vadd.f32 %v571, %v656
        %v673 = vadd.f32 %v572, %v657
        %v674 = vadd.f32 %v573, %v658
        %v675 = vadd.f32 %v574, %v659
        %688 = vrot.lane.b32.xlu0 %v575, 126
        %v689 = vpop.permute.xlu0 %688
        %690 = vrot.lane.b32.xlu0 %v576, 126
        %v691 = vpop.permute.xlu0 %690
        %692 = vrot.lane.b32.xlu0 %v577, 126
        %v693 = vpop.permute.xlu0 %692
        %694 = vrot.lane.b32.xlu0 %v578, 126
        %v695 = vpop.permute.xlu0 %694
        %696 = vrot.lane.b32.xlu0 %v579, 126
        %v697 = vpop.permute.xlu0 %696
        %698 = vrot.lane.b32.xlu0 %v580, 126
        %v699 = vpop.permute.xlu0 %698
        %700 = vrot.lane.b32.xlu0 %v581, 126
        %v701 = vpop.permute.xlu0 %700
        %702 = vrot.lane.b32.xlu0 %v582, 126
        %v703 = vpop.permute.xlu0 %702
        %704 = vrot.lane.b32.xlu0 %v583, 126
        %v705 = vpop.permute.xlu0 %704
        %706 = vrot.lane.b32.xlu0 %v584, 126
        %v707 = vpop.permute.xlu0 %706
        %708 = vrot.lane.b32.xlu0 %v585, 126
        %v709 = vpop.permute.xlu0 %708
        %710 = vrot.lane.b32.xlu0 %v586, 126
        %v711 = vpop.permute.xlu0 %710
        %vm712 = vcmask 1031168
        %v713 = vsel %vm712, %v689, %v691
        %v714 = vsel %vm712, %v691, %v693
        %v715 = vsel %vm712, %v695, %v697
        %v716 = vsel %vm712, %v697, %v699
        %v717 = vsel %vm712, %v701, %v703
        %v718 = vsel %vm712, %v703, %v705
        %v719 = vsel %vm712, %v707, %v709
        %v720 = vsel %vm712, %v709, %v711
        %v729 = vsel %vm517, %v713, 0.0
        %v730 = vsel %vm518, %v714, 0.0
        %v731 = vsel %vm517, %v715, 0.0
        %v732 = vsel %vm518, %v716, 0.0
        %v733 = vsel %vm517, %v717, 0.0
        %v734 = vsel %vm518, %v718, 0.0
        %v735 = vsel %vm517, %v719, 0.0
        %v736 = vsel %vm518, %v720, 0.0
        %737 = vset.pattern.permute.xlu0 2
        %738 = vperm.xlu0 %737, %v535
        %v739 = vpop.permute.xlu0 %738
        %741 = vset.pattern.permute.xlu0 2
        %742 = vperm.xlu0 %741, %v536
        %v743 = vpop.permute.xlu0 %742
        %745 = vset.pattern.permute.xlu0 2
        %746 = vperm.xlu0 %745, %v537
        %v747 = vpop.permute.xlu0 %746
        %749 = vset.pattern.permute.xlu0 2
        %750 = vperm.xlu0 %749, %v538
        %v751 = vpop.permute.xlu0 %750
        %v753 = vmul.f32 %v729, %v739
        %v754 = vmul.f32 %v730, %v739
        %v755 = vmul.f32 %v731, %v743
        %v756 = vmul.f32 %v732, %v743
        %v757 = vmul.f32 %v733, %v747
        %v758 = vmul.f32 %v734, %v747
        %v759 = vmul.f32 %v735, %v751
        %v760 = vmul.f32 %v736, %v751
        %v761 = vadd.f32 %v668, %v753
        %v762 = vadd.f32 %v669, %v754
        %v763 = vadd.f32 %v670, %v755
        %v764 = vadd.f32 %v671, %v756
        %v765 = vadd.f32 %v672, %v757
        %v766 = vadd.f32 %v673, %v758
        %v767 = vadd.f32 %v674, %v759
        %v768 = vadd.f32 %v675, %v760
        %769 = vrot.lane.b32.xlu0 %v575, 112
        %v770 = vpop.permute.xlu0 %769
        %771 = vrot.lane.b32.xlu0 %v576, 112
        %v772 = vpop.permute.xlu0 %771
        %773 = vrot.lane.b32.xlu0 %v577, 112
        %v774 = vpop.permute.xlu0 %773
        %775 = vrot.lane.b32.xlu0 %v578, 112
        %v776 = vpop.permute.xlu0 %775
        %777 = vrot.lane.b32.xlu0 %v579, 112
        %v778 = vpop.permute.xlu0 %777
        %779 = vrot.lane.b32.xlu0 %v580, 112
        %v780 = vpop.permute.xlu0 %779
        %781 = vrot.lane.b32.xlu0 %v581, 112
        %v782 = vpop.permute.xlu0 %781
        %783 = vrot.lane.b32.xlu0 %v582, 112
        %v784 = vpop.permute.xlu0 %783
        %785 = vrot.lane.b32.xlu0 %v583, 112
        %v786 = vpop.permute.xlu0 %785
        %787 = vrot.lane.b32.xlu0 %v584, 112
        %v788 = vpop.permute.xlu0 %787
        %789 = vrot.lane.b32.xlu0 %v585, 112
        %v790 = vpop.permute.xlu0 %789
        %791 = vrot.lane.b32.xlu0 %v586, 112
        %v792 = vpop.permute.xlu0 %791
        %vm793 = vcmask 916480
        %v794 = vsel %vm793, %v770, %v772
        %v795 = vsel %vm793, %v772, %v774
        %v796 = vsel %vm793, %v776, %v778
        %v797 = vsel %vm793, %v778, %v780
        %v798 = vsel %vm793, %v782, %v784
        %v799 = vsel %vm793, %v784, %v786
        %v800 = vsel %vm793, %v788, %v790
        %v801 = vsel %vm793, %v790, %v792
        %v810 = vsel %vm515, %v794, 0.0
        %v811 = vsel %vm516, %v795, 0.0
        %v812 = vsel %vm515, %v796, 0.0
        %v813 = vsel %vm516, %v797, 0.0
        %v814 = vsel %vm515, %v798, 0.0
        %v815 = vsel %vm516, %v799, 0.0
        %v816 = vsel %vm515, %v800, 0.0
        %v817 = vsel %vm516, %v801, 0.0
        %818 = vset.pattern.permute.xlu0 3
        %819 = vperm.xlu0 %818, %v535
        %v820 = vpop.permute.xlu0 %819
        %822 = vset.pattern.permute.xlu0 3
        %823 = vperm.xlu0 %822, %v536
        %v824 = vpop.permute.xlu0 %823
        %826 = vset.pattern.permute.xlu0 3
        %827 = vperm.xlu0 %826, %v537
        %v828 = vpop.permute.xlu0 %827
        %830 = vset.pattern.permute.xlu0 3
        %831 = vperm.xlu0 %830, %v538
        %v832 = vpop.permute.xlu0 %831
        %v834 = vmul.f32 %v810, %v820
        %v835 = vmul.f32 %v811, %v820
        %v836 = vmul.f32 %v812, %v824
        %v837 = vmul.f32 %v813, %v824
        %v838 = vmul.f32 %v814, %v828
        %v839 = vmul.f32 %v815, %v828
        %v840 = vmul.f32 %v816, %v832
        %v841 = vmul.f32 %v817, %v832
        %v842 = vadd.f32 %v761, %v834
        %v843 = vadd.f32 %v762, %v835
        %v844 = vadd.f32 %v763, %v836
        %v845 = vadd.f32 %v764, %v837
        %v846 = vadd.f32 %v765, %v838
        %v847 = vadd.f32 %v766, %v839
        %v848 = vadd.f32 %v767, %v840
        %v849 = vadd.f32 %v768, %v841
        %850 = vset.pattern.permute.xlu0 4
        %851 = vperm.xlu0 %850, %v535
        %v852 = vpop.permute.xlu0 %851
        %854 = vset.pattern.permute.xlu0 4
        %855 = vperm.xlu0 %854, %v536
        %v856 = vpop.permute.xlu0 %855
        %858 = vset.pattern.permute.xlu0 4
        %859 = vperm.xlu0 %858, %v537
        %v860 = vpop.permute.xlu0 %859
        %862 = vset.pattern.permute.xlu0 4
        %863 = vperm.xlu0 %862, %v538
        %v864 = vpop.permute.xlu0 %863
        %v866 = vmul.f32 %v575, %v852
        %v867 = vmul.f32 %v576, %v852
        %v868 = vmul.f32 %v577, %v852
        %v869 = vmul.f32 %v578, %v856
        %v870 = vmul.f32 %v579, %v856
        %v871 = vmul.f32 %v580, %v856
        %v872 = vmul.f32 %v581, %v860
        %v873 = vmul.f32 %v582, %v860
        %v874 = vmul.f32 %v583, %v860
        %v875 = vmul.f32 %v584, %v864
        %v876 = vmul.f32 %v585, %v864
        %v877 = vmul.f32 %v586, %v864
        %890 = vrot.lane.b32.xlu0 %v866, 111
        %v891 = vpop.permute.xlu0 %890
        %892 = vrot.lane.b32.xlu0 %v867, 111
        %v893 = vpop.permute.xlu0 %892
        %894 = vrot.lane.b32.xlu0 %v868, 111
        %v895 = vpop.permute.xlu0 %894
        %896 = vrot.lane.b32.xlu0 %v869, 111
        %v897 = vpop.permute.xlu0 %896
        %898 = vrot.lane.b32.xlu0 %v870, 111
        %v899 = vpop.permute.xlu0 %898
        %900 = vrot.lane.b32.xlu0 %v871, 111
        %v901 = vpop.permute.xlu0 %900
        %902 = vrot.lane.b32.xlu0 %v872, 111
        %v903 = vpop.permute.xlu0 %902
        %904 = vrot.lane.b32.xlu0 %v873, 111
        %v905 = vpop.permute.xlu0 %904
        %906 = vrot.lane.b32.xlu0 %v874, 111
        %v907 = vpop.permute.xlu0 %906
        %908 = vrot.lane.b32.xlu0 %v875, 111
        %v909 = vpop.permute.xlu0 %908
        %910 = vrot.lane.b32.xlu0 %v876, 111
        %v911 = vpop.permute.xlu0 %910
        %912 = vrot.lane.b32.xlu0 %v877, 111
        %v913 = vpop.permute.xlu0 %912
        %vm914 = vcmask 908288
        %v915 = vsel %vm914, %v891, %v893
        %v916 = vsel %vm914, %v893, %v895
        %v917 = vsel %vm914, %v897, %v899
        %v918 = vsel %vm914, %v899, %v901
        %v919 = vsel %vm914, %v903, %v905
        %v920 = vsel %vm914, %v905, %v907
        %v921 = vsel %vm914, %v909, %v911
        %v922 = vsel %vm914, %v911, %v913
        %v931 = vadd.f32 %v842, %v915
        %v932 = vadd.f32 %v843, %v916
        %v933 = vadd.f32 %v844, %v917
        %v934 = vadd.f32 %v845, %v918
        %v935 = vadd.f32 %v846, %v919
        %v936 = vadd.f32 %v847, %v920
        %v937 = vadd.f32 %v848, %v921
        %v938 = vadd.f32 %v849, %v922
        %939 = vrot.lane.b32.xlu0 %v575, 110
        %v940 = vpop.permute.xlu0 %939
        %941 = vrot.lane.b32.xlu0 %v576, 110
        %v942 = vpop.permute.xlu0 %941
        %943 = vrot.lane.b32.xlu0 %v577, 110
        %v944 = vpop.permute.xlu0 %943
        %945 = vrot.lane.b32.xlu0 %v578, 110
        %v946 = vpop.permute.xlu0 %945
        %947 = vrot.lane.b32.xlu0 %v579, 110
        %v948 = vpop.permute.xlu0 %947
        %949 = vrot.lane.b32.xlu0 %v580, 110
        %v950 = vpop.permute.xlu0 %949
        %951 = vrot.lane.b32.xlu0 %v581, 110
        %v952 = vpop.permute.xlu0 %951
        %953 = vrot.lane.b32.xlu0 %v582, 110
        %v954 = vpop.permute.xlu0 %953
        %955 = vrot.lane.b32.xlu0 %v583, 110
        %v956 = vpop.permute.xlu0 %955
        %957 = vrot.lane.b32.xlu0 %v584, 110
        %v958 = vpop.permute.xlu0 %957
        %959 = vrot.lane.b32.xlu0 %v585, 110
        %v960 = vpop.permute.xlu0 %959
        %961 = vrot.lane.b32.xlu0 %v586, 110
        %v962 = vpop.permute.xlu0 %961
        %vm963 = vcmask 900096
        %v964 = vsel %vm963, %v940, %v942
        %v965 = vsel %vm963, %v942, %v944
        %v966 = vsel %vm963, %v946, %v948
        %v967 = vsel %vm963, %v948, %v950
        %v968 = vsel %vm963, %v952, %v954
        %v969 = vsel %vm963, %v954, %v956
        %v970 = vsel %vm963, %v958, %v960
        %v971 = vsel %vm963, %v960, %v962
        %v980 = vsel %vm517, %v964, 0.0
        %v981 = vsel %vm518, %v965, 0.0
        %v982 = vsel %vm517, %v966, 0.0
        %v983 = vsel %vm518, %v967, 0.0
        %v984 = vsel %vm517, %v968, 0.0
        %v985 = vsel %vm518, %v969, 0.0
        %v986 = vsel %vm517, %v970, 0.0
        %v987 = vsel %vm518, %v971, 0.0
        %988 = vset.pattern.permute.xlu0 5
        %989 = vperm.xlu0 %988, %v535
        %v990 = vpop.permute.xlu0 %989
        %992 = vset.pattern.permute.xlu0 5
        %993 = vperm.xlu0 %992, %v536
        %v994 = vpop.permute.xlu0 %993
        %996 = vset.pattern.permute.xlu0 5
        %997 = vperm.xlu0 %996, %v537
        %v998 = vpop.permute.xlu0 %997
        %1000 = vset.pattern.permute.xlu0 5
        %1001 = vperm.xlu0 %1000, %v538
        %v1002 = vpop.permute.xlu0 %1001
        %v1004 = vmul.f32 %v980, %v990
        %v1005 = vmul.f32 %v981, %v990
        %v1006 = vmul.f32 %v982, %v994
        %v1007 = vmul.f32 %v983, %v994
        %v1008 = vmul.f32 %v984, %v998
        %v1009 = vmul.f32 %v985, %v998
        %v1010 = vmul.f32 %v986, %v1002
        %v1011 = vmul.f32 %v987, %v1002
        %v1012 = vadd.f32 %v931, %v1004
        %v1013 = vadd.f32 %v932, %v1005
        %v1014 = vadd.f32 %v933, %v1006
        %v1015 = vadd.f32 %v934, %v1007
        %v1016 = vadd.f32 %v935, %v1008
        %v1017 = vadd.f32 %v936, %v1009
        %v1018 = vadd.f32 %v937, %v1010
        %v1019 = vadd.f32 %v938, %v1011
        %1020 = vrot.lane.b32.xlu0 %v575, 96
        %v1021 = vpop.permute.xlu0 %1020
        %1022 = vrot.lane.b32.xlu0 %v576, 96
        %v1023 = vpop.permute.xlu0 %1022
        %1024 = vrot.lane.b32.xlu0 %v577, 96
        %v1025 = vpop.permute.xlu0 %1024
        %1026 = vrot.lane.b32.xlu0 %v578, 96
        %v1027 = vpop.permute.xlu0 %1026
        %1028 = vrot.lane.b32.xlu0 %v579, 96
        %v1029 = vpop.permute.xlu0 %1028
        %1030 = vrot.lane.b32.xlu0 %v580, 96
        %v1031 = vpop.permute.xlu0 %1030
        %1032 = vrot.lane.b32.xlu0 %v581, 96
        %v1033 = vpop.permute.xlu0 %1032
        %1034 = vrot.lane.b32.xlu0 %v582, 96
        %v1035 = vpop.permute.xlu0 %1034
        %1036 = vrot.lane.b32.xlu0 %v583, 96
        %v1037 = vpop.permute.xlu0 %1036
        %1038 = vrot.lane.b32.xlu0 %v584, 96
        %v1039 = vpop.permute.xlu0 %1038
        %1040 = vrot.lane.b32.xlu0 %v585, 96
        %v1041 = vpop.permute.xlu0 %1040
        %1042 = vrot.lane.b32.xlu0 %v586, 96
        %v1043 = vpop.permute.xlu0 %1042
        %vm1044 = vcmask 785408
        %v1045 = vsel %vm1044, %v1021, %v1023
        %v1046 = vsel %vm1044, %v1023, %v1025
        %v1047 = vsel %vm1044, %v1027, %v1029
        %v1048 = vsel %vm1044, %v1029, %v1031
        %v1049 = vsel %vm1044, %v1033, %v1035
        %v1050 = vsel %vm1044, %v1035, %v1037
        %v1051 = vsel %vm1044, %v1039, %v1041
        %v1052 = vsel %vm1044, %v1041, %v1043
        %v1061 = vsel %vm515, %v1045, 0.0
        %v1062 = vsel %vm516, %v1046, 0.0
        %v1063 = vsel %vm515, %v1047, 0.0
        %v1064 = vsel %vm516, %v1048, 0.0
        %v1065 = vsel %vm515, %v1049, 0.0
        %v1066 = vsel %vm516, %v1050, 0.0
        %v1067 = vsel %vm515, %v1051, 0.0
        %v1068 = vsel %vm516, %v1052, 0.0
        %1069 = vset.pattern.permute.xlu0 6
        %1070 = vperm.xlu0 %1069, %v535
        %v1071 = vpop.permute.xlu0 %1070
        %1073 = vset.pattern.permute.xlu0 6
        %1074 = vperm.xlu0 %1073, %v536
        %v1075 = vpop.permute.xlu0 %1074
        %1077 = vset.pattern.permute.xlu0 6
        %1078 = vperm.xlu0 %1077, %v537
        %v1079 = vpop.permute.xlu0 %1078
        %1081 = vset.pattern.permute.xlu0 6
        %1082 = vperm.xlu0 %1081, %v538
        %v1083 = vpop.permute.xlu0 %1082
        %v1085 = vmul.f32 %v1061, %v1071
        %v1086 = vmul.f32 %v1062, %v1071
        %v1087 = vmul.f32 %v1063, %v1075
        %v1088 = vmul.f32 %v1064, %v1075
        %v1089 = vmul.f32 %v1065, %v1079
        %v1090 = vmul.f32 %v1066, %v1079
        %v1091 = vmul.f32 %v1067, %v1083
        %v1092 = vmul.f32 %v1068, %v1083
        %v1093 = vadd.f32 %v1012, %v1085
        %v1094 = vadd.f32 %v1013, %v1086
        %v1095 = vadd.f32 %v1014, %v1087
        %v1096 = vadd.f32 %v1015, %v1088
        %v1097 = vadd.f32 %v1016, %v1089
        %v1098 = vadd.f32 %v1017, %v1090
        %v1099 = vadd.f32 %v1018, %v1091
        %v1100 = vadd.f32 %v1019, %v1092
        %1101 = vset.pattern.permute.xlu0 7
        %1102 = vperm.xlu0 %1101, %v535
        %v1103 = vpop.permute.xlu0 %1102
        %1105 = vset.pattern.permute.xlu0 7
        %1106 = vperm.xlu0 %1105, %v536
        %v1107 = vpop.permute.xlu0 %1106
        %1109 = vset.pattern.permute.xlu0 7
        %1110 = vperm.xlu0 %1109, %v537
        %v1111 = vpop.permute.xlu0 %1110
        %1113 = vset.pattern.permute.xlu0 7
        %1114 = vperm.xlu0 %1113, %v538
        %v1115 = vpop.permute.xlu0 %1114
        %v1117 = vmul.f32 %v575, %v1103
        %v1118 = vmul.f32 %v576, %v1103
        %v1119 = vmul.f32 %v577, %v1103
        %v1120 = vmul.f32 %v578, %v1107
        %v1121 = vmul.f32 %v579, %v1107
        %v1122 = vmul.f32 %v580, %v1107
        %v1123 = vmul.f32 %v581, %v1111
        %v1124 = vmul.f32 %v582, %v1111
        %v1125 = vmul.f32 %v583, %v1111
        %v1126 = vmul.f32 %v584, %v1115
        %v1127 = vmul.f32 %v585, %v1115
        %v1128 = vmul.f32 %v586, %v1115
        %1141 = vrot.lane.b32.xlu0 %v1117, 95
        %v1142 = vpop.permute.xlu0 %1141
        %1143 = vrot.lane.b32.xlu0 %v1118, 95
        %v1144 = vpop.permute.xlu0 %1143
        %1145 = vrot.lane.b32.xlu0 %v1119, 95
        %v1146 = vpop.permute.xlu0 %1145
        %1147 = vrot.lane.b32.xlu0 %v1120, 95
        %v1148 = vpop.permute.xlu0 %1147
        %1149 = vrot.lane.b32.xlu0 %v1121, 95
        %v1150 = vpop.permute.xlu0 %1149
        %1151 = vrot.lane.b32.xlu0 %v1122, 95
        %v1152 = vpop.permute.xlu0 %1151
        %1153 = vrot.lane.b32.xlu0 %v1123, 95
        %v1154 = vpop.permute.xlu0 %1153
        %1155 = vrot.lane.b32.xlu0 %v1124, 95
        %v1156 = vpop.permute.xlu0 %1155
        %1157 = vrot.lane.b32.xlu0 %v1125, 95
        %v1158 = vpop.permute.xlu0 %1157
        %1159 = vrot.lane.b32.xlu0 %v1126, 95
        %v1160 = vpop.permute.xlu0 %1159
        %1161 = vrot.lane.b32.xlu0 %v1127, 95
        %v1162 = vpop.permute.xlu0 %1161
        %1163 = vrot.lane.b32.xlu0 %v1128, 95
        %v1164 = vpop.permute.xlu0 %1163
        %vm1165 = vcmask 777216
        %v1166 = vsel %vm1165, %v1142, %v1144
        %v1167 = vsel %vm1165, %v1144, %v1146
        %v1168 = vsel %vm1165, %v1148, %v1150
        %v1169 = vsel %vm1165, %v1150, %v1152
        %v1170 = vsel %vm1165, %v1154, %v1156
        %v1171 = vsel %vm1165, %v1156, %v1158
        %v1172 = vsel %vm1165, %v1160, %v1162
        %v1173 = vsel %vm1165, %v1162, %v1164
        %v1182 = vadd.f32 %v1093, %v1166
        %v1183 = vadd.f32 %v1094, %v1167
        %v1184 = vadd.f32 %v1095, %v1168
        %v1185 = vadd.f32 %v1096, %v1169
        %v1186 = vadd.f32 %v1097, %v1170
        %v1187 = vadd.f32 %v1098, %v1171
        %v1188 = vadd.f32 %v1099, %v1172
        %v1189 = vadd.f32 %v1100, %v1173
        %1190 = vrot.lane.b32.xlu0 %v575, 94
        %v1191 = vpop.permute.xlu0 %1190
        %1192 = vrot.lane.b32.xlu0 %v576, 94
        %v1193 = vpop.permute.xlu0 %1192
        %1194 = vrot.lane.b32.xlu0 %v577, 94
        %v1195 = vpop.permute.xlu0 %1194
        %1196 = vrot.lane.b32.xlu0 %v578, 94
        %v1197 = vpop.permute.xlu0 %1196
        %1198 = vrot.lane.b32.xlu0 %v579, 94
        %v1199 = vpop.permute.xlu0 %1198
        %1200 = vrot.lane.b32.xlu0 %v580, 94
        %v1201 = vpop.permute.xlu0 %1200
        %1202 = vrot.lane.b32.xlu0 %v581, 94
        %v1203 = vpop.permute.xlu0 %1202
        %1204 = vrot.lane.b32.xlu0 %v582, 94
        %v1205 = vpop.permute.xlu0 %1204
        %1206 = vrot.lane.b32.xlu0 %v583, 94
        %v1207 = vpop.permute.xlu0 %1206
        %1208 = vrot.lane.b32.xlu0 %v584, 94
        %v1209 = vpop.permute.xlu0 %1208
        %1210 = vrot.lane.b32.xlu0 %v585, 94
        %v1211 = vpop.permute.xlu0 %1210
        %1212 = vrot.lane.b32.xlu0 %v586, 94
        %v1213 = vpop.permute.xlu0 %1212
        %vm1214 = vcmask 769024
        %v1215 = vsel %vm1214, %v1191, %v1193
        %v1216 = vsel %vm1214, %v1193, %v1195
        %v1217 = vsel %vm1214, %v1197, %v1199
        %v1218 = vsel %vm1214, %v1199, %v1201
        %v1219 = vsel %vm1214, %v1203, %v1205
        %v1220 = vsel %vm1214, %v1205, %v1207
        %v1221 = vsel %vm1214, %v1209, %v1211
        %v1222 = vsel %vm1214, %v1211, %v1213
        %v1231 = vsel %vm517, %v1215, 0.0
        %v1232 = vsel %vm518, %v1216, 0.0
        %v1233 = vsel %vm517, %v1217, 0.0
        %v1234 = vsel %vm518, %v1218, 0.0
        %v1235 = vsel %vm517, %v1219, 0.0
        %v1236 = vsel %vm518, %v1220, 0.0
        %v1237 = vsel %vm517, %v1221, 0.0
        %v1238 = vsel %vm518, %v1222, 0.0
        %1239 = vset.pattern.permute.xlu0 8
        %1240 = vperm.xlu0 %1239, %v535
        %v1241 = vpop.permute.xlu0 %1240
        %1243 = vset.pattern.permute.xlu0 8
        %1244 = vperm.xlu0 %1243, %v536
        %v1245 = vpop.permute.xlu0 %1244
        %1247 = vset.pattern.permute.xlu0 8
        %1248 = vperm.xlu0 %1247, %v537
        %v1249 = vpop.permute.xlu0 %1248
        %1251 = vset.pattern.permute.xlu0 8
        %1252 = vperm.xlu0 %1251, %v538
        %v1253 = vpop.permute.xlu0 %1252
        %v1255 = vmul.f32 %v1231, %v1241
        %v1256 = vmul.f32 %v1232, %v1241
        %v1257 = vmul.f32 %v1233, %v1245
        %v1258 = vmul.f32 %v1234, %v1245
        %v1259 = vmul.f32 %v1235, %v1249
        %v1260 = vmul.f32 %v1236, %v1249
        %v1261 = vmul.f32 %v1237, %v1253
        %v1262 = vmul.f32 %v1238, %v1253
        %v1263 = vadd.f32 %v1182, %v1255
        %v1264 = vadd.f32 %v1183, %v1256
        %v1265 = vadd.f32 %v1184, %v1257
        %v1266 = vadd.f32 %v1185, %v1258
        %v1267 = vadd.f32 %v1186, %v1259
        %v1268 = vadd.f32 %v1187, %v1260
        %v1269 = vadd.f32 %v1188, %v1261
        %v1270 = vadd.f32 %v1189, %v1262
        %1271 = vset.pattern.permute.xlu0 9
        %1272 = vperm.xlu0 %1271, %v535
        %v1273 = vpop.permute.xlu0 %1272
        %1275 = vset.pattern.permute.xlu0 9
        %1276 = vperm.xlu0 %1275, %v536
        %v1277 = vpop.permute.xlu0 %1276
        %1279 = vset.pattern.permute.xlu0 9
        %1280 = vperm.xlu0 %1279, %v537
        %v1281 = vpop.permute.xlu0 %1280
        %1283 = vset.pattern.permute.xlu0 9
        %1284 = vperm.xlu0 %1283, %v538
        %v1285 = vpop.permute.xlu0 %1284
        %v1287 = vadd.f32 %v1263, %v1273
        %v1288 = vadd.f32 %v1264, %v1273
        %v1289 = vadd.f32 %v1265, %v1277
        %v1290 = vadd.f32 %v1266, %v1277
        %v1291 = vadd.f32 %v1267, %v1281
        %v1292 = vadd.f32 %v1268, %v1281
        %v1293 = vadd.f32 %v1269, %v1285
        %v1294 = vadd.f32 %v1270, %v1285
        %v1295 = vmul.f32 %v1287, 0.70710677
        %v1296 = vmul.f32 %v1288, 0.70710677
        %v1297 = vmul.f32 %v1289, 0.70710677
        %v1298 = vmul.f32 %v1290, 0.70710677
        %v1299 = vmul.f32 %v1291, 0.70710677
        %v1300 = vmul.f32 %v1292, 0.70710677
        %v1301 = vmul.f32 %v1293, 0.70710677
        %v1302 = vmul.f32 %v1294, 0.70710677
        %v1303 = vand.u32 2147483647, %v1295
        %v1304 = vand.u32 2147483647, %v1296
        %v1305 = vand.u32 2147483647, %v1297
        %v1306 = vand.u32 2147483647, %v1298
        %v1307 = vand.u32 2147483647, %v1299
        %v1308 = vand.u32 2147483647, %v1300
        %v1309 = vand.u32 2147483647, %v1301
        %v1310 = vand.u32 2147483647, %v1302
        %v1311 = vmul.f32 %v1303, 0.3275911
        %v1312 = vmul.f32 %v1304, 0.3275911
        %v1313 = vmul.f32 %v1305, 0.3275911
        %v1314 = vmul.f32 %v1306, 0.3275911
        %v1315 = vmul.f32 %v1307, 0.3275911
        %v1316 = vmul.f32 %v1308, 0.3275911
        %v1317 = vmul.f32 %v1309, 0.3275911
        %v1318 = vmul.f32 %v1310, 0.3275911
        %v1319 = vadd.f32 %v1311, 1.0
        %v1320 = vadd.f32 %v1312, 1.0
        %v1321 = vadd.f32 %v1313, 1.0
        %v1322 = vadd.f32 %v1314, 1.0
        %v1323 = vadd.f32 %v1315, 1.0
        %v1324 = vadd.f32 %v1316, 1.0
        %v1325 = vadd.f32 %v1317, 1.0
        %v1326 = vadd.f32 %v1318, 1.0
        %v1327 = vrcp.pop %v1319
        %v1328 = vrcp.pop %v1320
        %v1329 = vrcp.pop %v1321
        %v1330 = vrcp.pop %v1322
        %v1331 = vrcp.pop %v1323
        %v1332 = vrcp.pop %v1324
        %v1333 = vrcp.pop %v1325
        %v1334 = vrcp.pop %v1326
        %v1335 = vmul.f32 %v1327, 1.0614054
        %v1336 = vmul.f32 %v1328, 1.0614054
        %v1337 = vmul.f32 %v1329, 1.0614054
        %v1338 = vmul.f32 %v1330, 1.0614054
        %v1339 = vmul.f32 %v1331, 1.0614054
        %v1340 = vmul.f32 %v1332, 1.0614054
        %v1341 = vmul.f32 %v1333, 1.0614054
        %v1342 = vmul.f32 %v1334, 1.0614054
        %v1343 = vadd.f32 %v1335, -1.4531521
        %v1344 = vadd.f32 %v1336, -1.4531521
        %v1345 = vadd.f32 %v1337, -1.4531521
        %v1346 = vadd.f32 %v1338, -1.4531521
        %v1347 = vadd.f32 %v1339, -1.4531521
        %v1348 = vadd.f32 %v1340, -1.4531521
        %v1349 = vadd.f32 %v1341, -1.4531521
        %v1350 = vadd.f32 %v1342, -1.4531521
        %v1351 = vmul.f32 %v1343, %v1327
        %v1352 = vmul.f32 %v1344, %v1328
        %v1353 = vmul.f32 %v1345, %v1329
        %v1354 = vmul.f32 %v1346, %v1330
        %v1355 = vmul.f32 %v1347, %v1331
        %v1356 = vmul.f32 %v1348, %v1332
        %v1357 = vmul.f32 %v1349, %v1333
        %v1358 = vmul.f32 %v1350, %v1334
        %v1359 = vadd.f32 %v1351, 1.4214138
        %v1360 = vadd.f32 %v1352, 1.4214138
        %v1361 = vadd.f32 %v1353, 1.4214138
        %v1362 = vadd.f32 %v1354, 1.4214138
        %v1363 = vadd.f32 %v1355, 1.4214138
        %v1364 = vadd.f32 %v1356, 1.4214138
        %v1365 = vadd.f32 %v1357, 1.4214138
        %v1366 = vadd.f32 %v1358, 1.4214138
        %v1367 = vmul.f32 %v1359, %v1327
        %v1368 = vmul.f32 %v1360, %v1328
        %v1369 = vmul.f32 %v1361, %v1329
        %v1370 = vmul.f32 %v1362, %v1330
        %v1371 = vmul.f32 %v1363, %v1331
        %v1372 = vmul.f32 %v1364, %v1332
        %v1373 = vmul.f32 %v1365, %v1333
        %v1374 = vmul.f32 %v1366, %v1334
        %v1375 = vadd.f32 %v1367, -0.28449672
        %v1376 = vadd.f32 %v1368, -0.28449672
        %v1377 = vadd.f32 %v1369, -0.28449672
        %v1378 = vadd.f32 %v1370, -0.28449672
        %v1379 = vadd.f32 %v1371, -0.28449672
        %v1380 = vadd.f32 %v1372, -0.28449672
        %v1381 = vadd.f32 %v1373, -0.28449672
        %v1382 = vadd.f32 %v1374, -0.28449672
        %v1383 = vmul.f32 %v1375, %v1327
        %v1384 = vmul.f32 %v1376, %v1328
        %v1385 = vmul.f32 %v1377, %v1329
        %v1386 = vmul.f32 %v1378, %v1330
        %v1387 = vmul.f32 %v1379, %v1331
        %v1388 = vmul.f32 %v1380, %v1332
        %v1389 = vmul.f32 %v1381, %v1333
        %v1390 = vmul.f32 %v1382, %v1334
        %v1391 = vadd.f32 %v1383, 0.2548296
        %v1392 = vadd.f32 %v1384, 0.2548296
        %v1393 = vadd.f32 %v1385, 0.2548296
        %v1394 = vadd.f32 %v1386, 0.2548296
        %v1395 = vadd.f32 %v1387, 0.2548296
        %v1396 = vadd.f32 %v1388, 0.2548296
        %v1397 = vadd.f32 %v1389, 0.2548296
        %v1398 = vadd.f32 %v1390, 0.2548296
        %v1399 = vmul.f32 %v1391, %v1327
        %v1400 = vmul.f32 %v1392, %v1328
        %v1401 = vmul.f32 %v1393, %v1329
        %v1402 = vmul.f32 %v1394, %v1330
        %v1403 = vmul.f32 %v1395, %v1331
        %v1404 = vmul.f32 %v1396, %v1332
        %v1405 = vmul.f32 %v1397, %v1333
        %v1406 = vmul.f32 %v1398, %v1334
        %v1407 = vsub.f32 0.0, %v1303
        %v1408 = vsub.f32 0.0, %v1304
        %v1409 = vsub.f32 0.0, %v1305
        %v1410 = vsub.f32 0.0, %v1306
        %v1411 = vsub.f32 0.0, %v1307
        %v1412 = vsub.f32 0.0, %v1308
        %v1413 = vsub.f32 0.0, %v1309
        %v1414 = vsub.f32 0.0, %v1310
        %v1415 = vmul.f32 %v1407, %v1303
        %v1416 = vmul.f32 %v1408, %v1304
        %v1417 = vmul.f32 %v1409, %v1305
        %v1418 = vmul.f32 %v1410, %v1306
        %v1419 = vmul.f32 %v1411, %v1307
        %v1420 = vmul.f32 %v1412, %v1308
        %v1421 = vmul.f32 %v1413, %v1309
        %v1422 = vmul.f32 %v1414, %v1310
        %v1423 = vmul.f32 %v1415, 1.442695
        %v1424 = vpow.pop %v1423
        %v1425 = vmul.f32 %v1416, 1.442695
        %v1426 = vpow.pop %v1425
        %v1427 = vmul.f32 %v1417, 1.442695
        %v1428 = vpow.pop %v1427
        %v1429 = vmul.f32 %v1418, 1.442695
        %v1430 = vpow.pop %v1429
        %v1431 = vmul.f32 %v1419, 1.442695
        %v1432 = vpow.pop %v1431
        %v1433 = vmul.f32 %v1420, 1.442695
        %v1434 = vpow.pop %v1433
        %v1435 = vmul.f32 %v1421, 1.442695
        %v1436 = vpow.pop %v1435
        %v1437 = vmul.f32 %v1422, 1.442695
        %v1438 = vpow.pop %v1437
        %v1439 = vmul.f32 %v1399, %v1424
        %v1440 = vmul.f32 %v1400, %v1426
        %v1441 = vmul.f32 %v1401, %v1428
        %v1442 = vmul.f32 %v1402, %v1430
        %v1443 = vmul.f32 %v1403, %v1432
        %v1444 = vmul.f32 %v1404, %v1434
        %v1445 = vmul.f32 %v1405, %v1436
        %v1446 = vmul.f32 %v1406, %v1438
        %v1447 = vsub.f32 1.0, %v1439
        %v1448 = vsub.f32 1.0, %v1440
        %v1449 = vsub.f32 1.0, %v1441
        %v1450 = vsub.f32 1.0, %v1442
        %v1451 = vsub.f32 1.0, %v1443
        %v1452 = vsub.f32 1.0, %v1444
        %v1453 = vsub.f32 1.0, %v1445
        %v1454 = vsub.f32 1.0, %v1446
        %vm1455 = vcmp.ge.f32.partialorder %v1295, 0.0
        %vm1456 = vcmp.ge.f32.partialorder %v1296, 0.0
        %vm1457 = vcmp.ge.f32.partialorder %v1297, 0.0
        %vm1458 = vcmp.ge.f32.partialorder %v1298, 0.0
        %vm1459 = vcmp.ge.f32.partialorder %v1299, 0.0
        %vm1460 = vcmp.ge.f32.partialorder %v1300, 0.0
        %vm1461 = vcmp.ge.f32.partialorder %v1301, 0.0
        %vm1462 = vcmp.ge.f32.partialorder %v1302, 0.0
        %v1463 = vsub.f32 0.0, %v1447
        %v1464 = vsub.f32 0.0, %v1448
        %v1465 = vsub.f32 0.0, %v1449
        %v1466 = vsub.f32 0.0, %v1450
        %v1467 = vsub.f32 0.0, %v1451
        %v1468 = vsub.f32 0.0, %v1452
        %v1469 = vsub.f32 0.0, %v1453
        %v1470 = vsub.f32 0.0, %v1454
        %v1471 = vsel %vm1455, %v1447, %v1463
        %v1472 = vsel %vm1456, %v1448, %v1464
        %v1473 = vsel %vm1457, %v1449, %v1465
        %v1474 = vsel %vm1458, %v1450, %v1466
        %v1475 = vsel %vm1459, %v1451, %v1467
        %v1476 = vsel %vm1460, %v1452, %v1468
        %v1477 = vsel %vm1461, %v1453, %v1469
        %v1478 = vsel %vm1462, %v1454, %v1470
        %v1479 = vmul.f32 %v1287, 0.5
        %v1480 = vmul.f32 %v1288, 0.5
        %v1481 = vmul.f32 %v1289, 0.5
        %v1482 = vmul.f32 %v1290, 0.5
        %v1483 = vmul.f32 %v1291, 0.5
        %v1484 = vmul.f32 %v1292, 0.5
        %v1485 = vmul.f32 %v1293, 0.5
        %v1486 = vmul.f32 %v1294, 0.5
        %v1487 = vadd.f32 %v1471, 1.0
        %v1488 = vadd.f32 %v1472, 1.0
        %v1489 = vadd.f32 %v1473, 1.0
        %v1490 = vadd.f32 %v1474, 1.0
        %v1491 = vadd.f32 %v1475, 1.0
        %v1492 = vadd.f32 %v1476, 1.0
        %v1493 = vadd.f32 %v1477, 1.0
        %v1494 = vadd.f32 %v1478, 1.0
        %v1495 = vmul.f32 %v1479, %v1487
        %v1496 = vmul.f32 %v1480, %v1488
        %v1497 = vmul.f32 %v1481, %v1489
        %v1498 = vmul.f32 %v1482, %v1490
        %v1499 = vmul.f32 %v1483, %v1491
        %v1500 = vmul.f32 %v1484, %v1492
        %v1501 = vmul.f32 %v1485, %v1493
        %v1502 = vmul.f32 %v1486, %v1494
        %v1503 = vpack.c.bf16 %v1496, %v1495
        %v1504 = vpack.c.bf16 %v1498, %v1497
        %v1505 = vpack.c.bf16 %v1500, %v1499
        %v1506 = vpack.c.bf16 %v1502, %v1501
        %1507 = vst [vmem:[%s300] sm:$0xff] %v1503
        %1508 = vst [vmem:[%s300 + $0x8] sm:$0xff] %v1504
        %1509 = vst [vmem:[%s300 + $0x10] sm:$0xff] %v1505
        %1510 = vst [vmem:[%s300 + $0x18] sm:$0xff] %v1506
        %v1511 = vadd.f32 %v1495, %v1496
        %1512 = vadd.xlane.f32.xlu0 %v1511
        %v1513 = vpop.xlane.xlu0 %1512
        %v1514 = vadd.f32 %v1497, %v1498
        %1515 = vadd.xlane.f32.xlu0 %v1514
        %v1516 = vpop.xlane.xlu0 %1515
        %v1517 = vadd.f32 %v1499, %v1500
        %1518 = vadd.xlane.f32.xlu0 %v1517
        %v1519 = vpop.xlane.xlu0 %1518
        %v1520 = vadd.f32 %v1501, %v1502
        %1521 = vadd.xlane.f32.xlu0 %v1520
        %v1522 = vpop.xlane.xlu0 %1521
        %vm1523 = vcmask 7168
        %1524 = vst.msk [vmem:[%s345] sm:$0xff] %vm1523, %v1513
        %1525 = vst.msk [vmem:[%s345 + $0x8] sm:$0xff] %vm1523, %v1516
        %1526 = vst.msk [vmem:[%s345 + $0x10] sm:$0xff] %vm1523, %v1519
        %1527 = vst.msk [vmem:[%s345 + $0x18] sm:$0xff] %vm1523, %v1522
        %v1528 = vmul.f32 %v1495, %v1495
        %v1529 = vmul.f32 %v1496, %v1496
        %v1530 = vmul.f32 %v1497, %v1497
        %v1531 = vmul.f32 %v1498, %v1498
        %v1532 = vmul.f32 %v1499, %v1499
        %v1533 = vmul.f32 %v1500, %v1500
        %v1534 = vmul.f32 %v1501, %v1501
        %v1535 = vmul.f32 %v1502, %v1502
        %v1536 = vadd.f32 %v1528, %v1529
        %1537 = vadd.xlane.f32.xlu0 %v1536
        %v1538 = vpop.xlane.xlu0 %1537
        %v1539 = vadd.f32 %v1530, %v1531
        %1540 = vadd.xlane.f32.xlu0 %v1539
        %v1541 = vpop.xlane.xlu0 %1540
        %v1542 = vadd.f32 %v1532, %v1533
        %1543 = vadd.xlane.f32.xlu0 %v1542
        %v1544 = vpop.xlane.xlu0 %1543
        %v1545 = vadd.f32 %v1534, %v1535
        %1546 = vadd.xlane.f32.xlu0 %v1545
        %v1547 = vpop.xlane.xlu0 %1546
        %1548 = vst.msk [vmem:[%s355] sm:$0xff] %vm1523, %v1538
        %1549 = vst.msk [vmem:[%s355 + $0x8] sm:$0xff] %vm1523, %v1541
        %1550 = vst.msk [vmem:[%s355 + $0x10] sm:$0xff] %vm1523, %v1544
        %1551 = vst.msk [vmem:[%s355 + $0x18] sm:$0xff] %vm1523, %v1547
        %s1552 = sand.u32 %s125, 1
        %s1553 = scalar_lea.sflag [#allocation5], %s1552
        %s1554 = sand.u32 %s125, 1
        %s1555 = smul.addr %s1554, 32
        %s1556 = scalar_lea.vmem [#allocation6], %s1555
        %s1557 = smul.u32 4, %s28
        %p1558 = scmp.lt.s32.totalorder %s27, 1
        %s1559 = scalar_select %p1558, %s27, 1
        %p1560 = scmp.lt.s32.totalorder %s1557, 3
        %s1561 = scalar_select %p1560, %s1557, 3
        %s1562 = smul.addr %s1559, 4
        %s1563 = sadd.s32 %s1561, %s1562
        %s1564 = smul.addr %s1563, 8
        %s1565 = scalar_lea.vmem %s4, %s1564
        %s1566 = smul.u32 4, %s28
        %p1567 = scmp.lt.s32.totalorder %s27, 1
        %s1568 = scalar_select %p1567, %s27, 1
        %p1569 = scmp.lt.s32.totalorder %s1566, 3
        %s1570 = scalar_select %p1569, %s1566, 3
        %s1571 = smul.addr %s1568, 4
        %s1572 = sadd.s32 %s1570, %s1571
        %s1573 = smul.addr %s1572, 8
        %s1574 = scalar_lea.vmem %s5, %s1573
        // Predicated region
        $region37: #{tpu_custom_call.1} parent=31 // pred_check
          %p1575 = pneg %p135
        $region38: #{tpu_custom_call.1} parent=31 // pred_check_branch
          %1577 = sbr.rel (%p1575) target = $region40
        $region39: #{tpu_custom_call.1} parent=31 // pred_region
          %s1578 = smul.u32 4, %s28
          %1580 = vsyncadd %s1553, 0
          %s1581 = smul.addr %s1578, 2
          %s1582 = smul.addr %s27, 8
          %s1583 = sadd.s32 %s1581, %s1582
          %s1584 = smul.addr %s1583, 4
          %s1585 = scalar_lea.hbm %s3, %s1584
          %s1586 = sshll.u32 %s1556, 4
          %s1587 = int_to_ptr.vmem [resolvable:$true] %s1586
          %s1588 = sshll.u32 %s1585, 4
          %s1589 = int_to_ptr.hbm [resolvable:$true] %s1588
          %1594 = dma.vmem_to_hbm [thread:$0]  %s1587, 512, %s1589, %s1553, 128, 128, 8
        $region40: #{tpu_custom_call.1} parent=31 // pred_fallthru
          _
        // Predicated region
        $region41: #{tpu_custom_call.1} parent=31 // pred_check
          %p1595 = pneg %p163
        $region42: #{tpu_custom_call.1} parent=31 // pred_check_branch
          %1597 = sbr.rel (%p1595) target = $region44
        $region43: #{tpu_custom_call.1} parent=31 // pred_region
          %s1598 = smul.u32 4, %s28
        $region44: #{tpu_custom_call.1} parent=31 // pred_fallthru
          _
        // Predicated region
        $region45: #{tpu_custom_call.1} parent=31 // pred_check
          %p1599 = pneg %p191
        $region46: #{tpu_custom_call.1} parent=31 // pred_check_branch
          %1601 = sbr.rel (%p1599) target = $region48
        $region47: #{tpu_custom_call.1} parent=31 // pred_region
          %s1602 = smul.u32 4, %s28
        $region48: #{tpu_custom_call.1} parent=31 // pred_fallthru
          _
      $region32: #{tpu_custom_call.1} parent=5 // pred_fallthru
        _
      %p1603 = scmp.le.s32.totalorder 2, %s18
      // Predicated region
      $region49: #{tpu_custom_call.1} parent=5 // pred_check
        %p1604 = pneg %p1603
      $region50: #{tpu_custom_call.1} parent=5 // pred_check_branch
        %1606 = sbr.rel (%p1604) target = $region52
      $region51: #{tpu_custom_call.1} parent=5 // pred_region
        %s1607 = ssub.s32 %s18, 2
        // Predicated region
        $region53: #{tpu_custom_call.1} parent=51 // pred_check
          %p1608 = pneg %p141
        $region54: #{tpu_custom_call.1} parent=51 // pred_check_branch
          %1610 = sbr.rel (%p1608) target = $region56
        $region55: #{tpu_custom_call.1} parent=51 // pred_region
          %s1611 = sand.u32 %s126, 1
          %s1612 = scalar_lea.sflag [#allocation5], %s1611
          %s1613 = sand.u32 %s126, 1
          %s1614 = smul.addr %s1613, 32
          %s1615 = scalar_lea.vmem [#allocation6], %s1614
          %1617 = dma.done %s1612, 512
        $region56: #{tpu_custom_call.1} parent=51 // pred_fallthru
          _
        // Predicated region
        $region57: #{tpu_custom_call.1} parent=51 // pred_check
          %p1618 = pneg %p169
        $region58: #{tpu_custom_call.1} parent=51 // pred_check_branch
          %1620 = sbr.rel (%p1618) target = $region60
        $region59: #{tpu_custom_call.1} parent=51 // pred_region
          %s1621 = smul.u32 4, %s30
          %p1622 = scmp.lt.s32.totalorder %s29, 1
          %s1623 = scalar_select %p1622, %s29, 1
          %p1624 = scmp.lt.s32.totalorder %s1621, 3
          %s1625 = scalar_select %p1624, %s1621, 3
          %s1626 = smul.addr %s1623, 4
          %s1627 = sadd.s32 %s1625, %s1626
          %s1628 = smul.addr %s1627, 8
          %s1629 = scalar_lea.vmem %s4, %s1628
        $region60: #{tpu_custom_call.1} parent=51 // pred_fallthru
          _
        // Predicated region
        $region61: #{tpu_custom_call.1} parent=51 // pred_check
          %p1630 = pneg %p197
        $region62: #{tpu_custom_call.1} parent=51 // pred_check_branch
          %1632 = sbr.rel (%p1630) target = $region64
        $region63: #{tpu_custom_call.1} parent=51 // pred_region
          %s1633 = smul.u32 4, %s30
          %p1634 = scmp.lt.s32.totalorder %s29, 1
          %s1635 = scalar_select %p1634, %s29, 1
          %p1636 = scmp.lt.s32.totalorder %s1633, 3
          %s1637 = scalar_select %p1636, %s1633, 3
          %s1638 = smul.addr %s1635, 4
          %s1639 = sadd.s32 %s1637, %s1638
          %s1640 = smul.addr %s1639, 8
          %s1641 = scalar_lea.vmem %s5, %s1640
        $region64: #{tpu_custom_call.1} parent=51 // pred_fallthru
          _
      $region52: #{tpu_custom_call.1} parent=5 // pred_fallthru
        _
    $region6: #{tpu_custom_call.1} parent=1 // loop_footer
      %s22 = sadd.s32 1, %s18
    $region7: #{tpu_custom_call.1} parent=1 // loop_footer_branch
      %17 = sbr.rel target = $region3
    $region8: #{tpu_custom_call.1} parent=1 // loop_exit
      _
    %1642 = vsyncpa [#allocation4], 1
    %s1643 = scalar_lea.sflag [#allocation4], 1
    %1644 = vsyncpa %s1643, 1
    %1645 = vsyncpa [#allocation5], 1
    %s1646 = scalar_lea.sflag [#allocation5], 1
    %1647 = vsyncpa %s1646, 1

</llo_original>
